<compile_context>
chip_gen: v7x
topology: tpu7x:2x2x1
jax: 0.10.0
libtpu: 0.0.40
codegen_flags: <defaults>
</compile_context>

<pallas_src>
import jax
import jax.numpy as jnp
from jax.experimental import pallas as pl
from jax.experimental.pallas import tpu as pltpu


def _ceil_to(v, m):
    return ((v + m - 1) // m) * m


def _vmem_bytes_estimate(TH, W, C_in, Cp, esize):
    """Rough per-kernel VMEM footprint: double-buffered blocks + scratch + temporaries."""
    sub = 32 // esize                       # sublane tile: 8 rows (f32), 16 rows (bf16)
    lane = 128
    x_blk = TH * _ceil_to(W + 2, sub) * _ceil_to(C_in, lane) * esize
    xh_blk = 2 * _ceil_to(W + 2, sub) * _ceil_to(C_in, lane) * esize
    w_blk = 9 * _ceil_to(C_in, sub) * _ceil_to(Cp, lane) * esize
    ss_blk = 2 * 8 * _ceil_to(Cp, lane) * 4
    P, Ph, Po = TH * W, (TH // 2) * W, (TH // 2) * (W // 2)
    o_blk = _ceil_to(Po, 8) * _ceil_to(Cp, lane) * 4
    xt_scr = (TH + 2) * _ceil_to(W + 2, sub) * _ceil_to(C_in, lane) * esize
    vp_scr = _ceil_to(Ph, 8) * _ceil_to(Cp, lane) * 4
    temporaries = 3 * _ceil_to(P, 8) * _ceil_to(Cp, lane) * 4   # acc + matmul operands
    return 2 * (x_blk + xh_blk + w_blk + ss_blk + o_blk) + xt_scr + vp_scr + temporaries


def convblock_kernel(x_ref, xh_ref, w_ref, scale_ref, shift_ref, o_ref, xt_ref, vpool_ref):
    # x_ref:     (TH, W+2, C_in)   main rows [r*TH, r*TH+TH) of the zero-padded NHWC image
    # xh_ref:    (2, W+2, C_in)    bottom halo rows [r*TH+TH, r*TH+TH+2) (same HBM array)
    # w_ref:     (9, C_in, Cp)     conv taps, tap index t = kh*3 + kw
    # scale_ref: (1, Cp) f32       folded BatchNorm scale (0 in padded channels)
    # shift_ref: (1, Cp) f32       folded BatchNorm shift + conv bias (0 in padded channels)
    # o_ref:     (Po, Cp) f32      pooled output tile, rows in (ho, wo) order
    # xt_ref:    (TH+2, W+2, C_in) VMEM scratch: assembled halo window
    # vpool_ref: (Ph, Cp) f32      VMEM scratch: vertically pooled slab
    TH, Wp2, C_in = x_ref.shape
    W = Wp2 - 2
    Cp = o_ref.shape[-1]
    P = TH * W
    Hot = TH // 2
    Wo = W // 2
    Po = Hot * Wo

    # ---- assemble the (TH+2)-row halo window in VMEM (two slab copies, cheap) ----
    xt_ref[0:TH] = x_ref[...]
    xt_ref[TH:TH + 2] = xh_ref[...]

    # ---- 3x3 conv: 9 shifted (pixels, C_in) @ (C_in, Cp) MXU dots summed in a single
    #      expression with f32 accumulation (no accumulator read-modify-write) ----
    acc = None
    for t in range(9):
        kh, kw = divmod(t, 3)
        patch = xt_ref[kh:kh + TH, kw:kw + W, :].reshape(P, C_in)
        d = jnp.dot(patch, w_ref[t], preferred_element_type=jnp.float32)
        acc = d if acc is None else acc + d                       # (P, Cp) f32

    scale = scale_ref[...]                                        # (1, Cp) f32
    shift = shift_ref[...]

    def bn_relu(y):
        return jnp.maximum(y * scale + shift, 0.0)

    # ---- 2x2 max pool, vertical half first: partners are contiguous W-row blocks of
    #      the flat (h, w) pixel order.  BN+ReLU is folded into the two operands so the
    #      conv result is never stored and re-loaded before pooling. ----
    vparts = []
    for ho in range(Hot):
        top = acc[(2 * ho) * W:(2 * ho + 1) * W, :]
        bot = acc[(2 * ho + 1) * W:(2 * ho + 2) * W, :]
        vparts.append(jnp.maximum(bn_relu(top), bn_relu(bot)))
    vpool_ref[...] = jnp.concatenate(vparts, axis=0)              # one (Ph, Cp) store

    # ---- horizontal half on the half-size slab: partners are adjacent rows
    #      (even / odd w) -> two stride-2 sublane reads, one lane-dense output store ----
    o_ref[...] = jnp.maximum(vpool_ref[pl.ds(0, Po, stride=2), :],
                             vpool_ref[pl.ds(1, Po, stride=2), :])


def conv_block_forward(x, conv_w, conv_b, gamma, beta, run_mean, run_var,
                       eps=1e-5, max_tile_pixels=2048, compute_dtype=jnp.bfloat16,
                       vmem_budget_bytes=40 * 1024 * 1024):
    """ConvBlock forward. x: (N, C_in, H, W) f32 NCHW -> (N, C_out, H//2, W//2) f32."""
    N, C_in, H, W = x.shape
    C_out = conv_w.shape[0]
    assert H % 2 == 0 and W % 2 == 0, "MaxPool2d(2) needs even H and W"

    # Lane-dense (padded) output channels; see TODO at top for the small-C_out trade-off.
    Cp = ((C_out + 127) // 128) * 128
    esize = jnp.finfo(compute_dtype).bits // 8

    # ---- row-tile selection: even divisor of H, pixel + VMEM budget, >=2 programs ----
    even_divs = [d for d in range(2, H + 1, 2) if H % d == 0]
    fitting = [d for d in even_divs
               if d * W <= max_tile_pixels
               and _vmem_bytes_estimate(d, W, C_in, Cp, esize) <= vmem_budget_bytes]
    if not fitting:
        fitting = [even_divs[0]]
    if N == 1:                               # v7x: keep both TensorCores busy at batch 1
        two_core = [d for d in fitting if H // d >= 2]
        if two_core:
            fitting = two_core
    TH = max(fitting)
    R = H // TH
    Ho, Wo = H // 2, W // 2
    Hot = TH // 2
    Po = Hot * Wo
    Ph = Hot * W

    # ---- padded NHWC input, cast once to the matmul dtype (no halo-duplicated copy) ----
    x_nhwc = jnp.transpose(x, (0, 2, 3, 1))
    xp = jnp.pad(x_nhwc, ((0, 0), (1, 1), (1, 1), (0, 0))).astype(compute_dtype)

    # ---- weights per tap: (C_out, C_in, 3, 3) -> (9, C_in, Cp), tap index kh*3+kw ----
    w_taps = jnp.transpose(conv_w, (2, 3, 1, 0)).reshape(9, C_in, C_out)
    w_taps = jnp.pad(w_taps, ((0, 0), (0, 0), (0, Cp - C_out))).astype(compute_dtype)

    # ---- fold conv bias + eval-mode BatchNorm into per-channel scale/shift (f32) ----
    scale = (gamma / jnp.sqrt(run_var + eps)).astype(jnp.float32)
    shift = (beta + scale * (conv_b - run_mean)).astype(jnp.float32)
    scale_p = jnp.pad(scale, (0, Cp - C_out)).reshape(1, Cp)
    shift_p = jnp.pad(shift, (0, Cp - C_out)).reshape(1, Cp)

    vmem_limit = int(min(max(1.3 * _vmem_bytes_estimate(TH, W, C_in, Cp, esize) + (4 << 20),
                             32 << 20), 100 << 20))
    halo_blk = TH // 2   # halo block index stride, in units of 2-row blocks

    out = pl.pallas_call(
        convblock_kernel,
        out_shape=jax.ShapeDtypeStruct((N, R, Po, Cp), jnp.float32),
        grid_spec=pltpu.PrefetchScalarGridSpec(
            num_scalar_prefetch=0,
            grid=(N, R),
            in_specs=[
                # main TH-row window of the padded image (non-overlapping blocks)
                pl.BlockSpec((None, TH, W + 2, C_in), lambda n, r: (n, r, 0, 0)),
                # 2-row bottom halo = first two padded rows after the main window
                pl.BlockSpec((None, 2, W + 2, C_in),
                             lambda n, r: (n, (r + 1) * halo_blk, 0, 0)),
                # weights / BN params: constant index maps -> stay resident in VMEM
                pl.BlockSpec((9, C_in, Cp), lambda n, r: (0, 0, 0)),
                pl.BlockSpec((1, Cp), lambda n, r: (0, 0)),
                pl.BlockSpec((1, Cp), lambda n, r: (0, 0)),
            ],
            out_specs=pl.BlockSpec((None, None, Po, Cp), lambda n, r: (n, r, 0, 0)),
            scratch_shapes=[
                pltpu.VMEM((TH + 2, W + 2, C_in), compute_dtype),   # halo window
                pltpu.VMEM((Ph, Cp), jnp.float32),                  # vertically pooled slab
            ],
        ),
        compiler_params=pltpu.CompilerParams(
            dimension_semantics=("parallel", "parallel"),
            vmem_limit_bytes=vmem_limit),
    )(xp, xp, w_taps, scale_p, shift_p)

    out = out.reshape(N, Ho, Wo, Cp)[..., :C_out]      # drop lane padding
    return jnp.transpose(out, (0, 3, 1, 2))            # NHWC (pooled) -> NCHW


def _reference(x, conv_w, conv_b, gamma, beta, run_mean, run_var, eps=1e-5,
               compute_dtype=jnp.float32):
    """Plain JAX/XLA reference of the same forward pass (matmul dtype configurable)."""
    y = jax.lax.conv_general_dilated(
        x.astype(compute_dtype), conv_w.astype(compute_dtype),
        window_strides=(1, 1), padding=((1, 1), (1, 1)),
        dimension_numbers=("NCHW", "OIHW", "NCHW"),
        preferred_element_type=jnp.float32)
    y = y + conv_b[None, :, None, None]
    y = gamma[None, :, None, None] * (y - run_mean[None, :, None, None]) / \
        jnp.sqrt(run_var[None, :, None, None] + eps) + beta[None, :, None, None]
    y = jnp.maximum(y, 0.0)
    y = jax.lax.reduce_window(y, -jnp.inf, jax.lax.max,
                              (1, 1, 2, 2), (1, 1, 2, 2), "VALID")
    return y


if __name__ == "__main__":
    key = jax.random.PRNGKey(0)
    kx, kw, kb, kg, kbe, km, kv = jax.random.split(key, 7)

    # ConvBlock(conv_params=(4, 8, 2, True), output_params=(8,)) at small shapes
    N, C_in, C_out, H, W = 2, 4, 8, 16, 16
    x = jax.random.normal(kx, (N, C_in, H, W), jnp.float32)
    conv_w = 0.1 * jax.random.normal(kw, (C_out, C_in, 3, 3), jnp.float32)
    conv_b = 0.1 * jax.random.normal(kb, (C_out,), jnp.float32)
    gamma = 1.0 + 0.1 * jax.random.normal(kg, (C_out,), jnp.float32)
    beta = 0.1 * jax.random.normal(kbe, (C_out,), jnp.float32)
    run_mean = 0.1 * jax.random.normal(km, (C_out,), jnp.float32)
    run_var = jnp.abs(jax.random.normal(kv, (C_out,), jnp.float32)) + 0.5

    # optimized bf16-matmul path (max_tile_pixels=128 -> 2 row tiles, exercises the
    # (N, R) grid and the bottom-halo BlockSpec)
    out = conv_block_forward(x, conv_w, conv_b, gamma, beta, run_mean, run_var,
                             max_tile_pixels=128, compute_dtype=jnp.bfloat16)
    out = jax.block_until_ready(out)
    assert out.shape == (N, C_out, H // 2, W // 2), out.shape
    ref_bf16 = _reference(x, conv_w, conv_b, gamma, beta, run_mean, run_var,
                          compute_dtype=jnp.bfloat16)
    err_bf16 = float(jnp.max(jnp.abs(out - ref_bf16)))
    assert jnp.allclose(out, ref_bf16, atol=1e-3, rtol=1e-3), err_bf16

    # exact-semantics check (f32 matmul operands) against the f32 module reference
    out_f32 = conv_block_forward(x, conv_w, conv_b, gamma, beta, run_mean, run_var,
                                 max_tile_pixels=128, compute_dtype=jnp.float32)
    out_f32 = jax.block_until_ready(out_f32)
    ref_f32 = _reference(x, conv_w, conv_b, gamma, beta, run_mean, run_var,
                         compute_dtype=jnp.float32)
    err_f32 = float(jnp.max(jnp.abs(out_f32 - ref_f32)))
    assert jnp.allclose(out_f32, ref_f32, atol=1e-4, rtol=1e-4), err_f32

    print("KERNEL_OK")
</pallas_src>

<mosaic_0001>
module attributes {stable_mosaic.version = 11 : i64} {
  func.func @convblock_kernel(%arg0: i32, %arg1: i32, %arg2: memref<1x8x18x4xbf16, #tpu.memory_space<vmem>>, %arg3: memref<1x2x18x4xbf16, #tpu.memory_space<vmem>>, %arg4: memref<9x4x128xbf16, #tpu.memory_space<vmem>>, %arg5: memref<1x128xf32, #tpu.memory_space<vmem>>, %arg6: memref<1x128xf32, #tpu.memory_space<vmem>>, %arg7: memref<1x1x32x128xf32, #tpu.memory_space<vmem>>, %arg8: memref<10x18x4xbf16, #tpu.memory_space<vmem>>, %arg9: memref<64x128xf32, #tpu.memory_space<vmem>>) attributes {dimension_semantics = [#tpu.dimension_semantics<parallel>, #tpu.dimension_semantics<parallel>], iteration_bounds = array<i64: 2, 2>, scalar_prefetch = 0 : i64, scratch_operands = 2 : i64, tpu.core_type = #tpu.core_type<tc>, window_params = [{transform_indices = @transform_0, window_bounds = array<i64: 1, 8, 18, 4>}, {transform_indices = @transform_1, window_bounds = array<i64: 1, 2, 18, 4>}, {pipeline_mode = #tpu.pipeline_mode<synchronous>, transform_indices = @transform_2, window_bounds = array<i64: 9, 4, 128>}, {pipeline_mode = #tpu.pipeline_mode<synchronous>, transform_indices = @transform_3, window_bounds = array<i64: 1, 128>}, {pipeline_mode = #tpu.pipeline_mode<synchronous>, transform_indices = @transform_4, window_bounds = array<i64: 1, 128>}, {transform_indices = @transform_5, window_bounds = array<i64: 1, 1, 32, 128>}]} {
    %c0 = arith.constant 0 : index
    %c0_0 = arith.constant 0 : index
    %c0_1 = arith.constant 0 : index
    %c0_2 = arith.constant 0 : index
    %0 = vector.load %arg2[%c0, %c0_0, %c0_1, %c0_2] : memref<1x8x18x4xbf16, #tpu.memory_space<vmem>>, vector<1x8x18x4xbf16>
    %1 = vector.shape_cast %0 : vector<1x8x18x4xbf16> to vector<8x18x4xbf16>
    %c0_3 = arith.constant 0 : index
    %c0_4 = arith.constant 0 : index
    %c0_5 = arith.constant 0 : index
    %2 = vector.load %arg8[%c0_3, %c0_4, %c0_5] : memref<10x18x4xbf16, #tpu.memory_space<vmem>>, vector<8x18x4xbf16>
    tpu.vector_store %arg8[%c0_3, %c0_4, %c0_5], %1 {strides = array<i32>} : memref<10x18x4xbf16, #tpu.memory_space<vmem>>, vector<8x18x4xbf16>,
    %c0_6 = arith.constant 0 : index
    %c0_7 = arith.constant 0 : index
    %c0_8 = arith.constant 0 : index
    %c0_9 = arith.constant 0 : index
    %3 = vector.load %arg3[%c0_6, %c0_7, %c0_8, %c0_9] : memref<1x2x18x4xbf16, #tpu.memory_space<vmem>>, vector<1x2x18x4xbf16>
    %4 = vector.shape_cast %3 : vector<1x2x18x4xbf16> to vector<2x18x4xbf16>
    %c8 = arith.constant 8 : index
    %c0_10 = arith.constant 0 : index
    %c0_11 = arith.constant 0 : index
    %5 = vector.load %arg8[%c8, %c0_10, %c0_11] : memref<10x18x4xbf16, #tpu.memory_space<vmem>>, vector<2x18x4xbf16>
    tpu.vector_store %arg8[%c8, %c0_10, %c0_11], %4 {strides = array<i32>} : memref<10x18x4xbf16, #tpu.memory_space<vmem>>, vector<2x18x4xbf16>,
    %c0_12 = arith.constant 0 : index
    %c0_13 = arith.constant 0 : index
    %c0_14 = arith.constant 0 : index
    %6 = vector.load %arg8[%c0_12, %c0_13, %c0_14] : memref<10x18x4xbf16, #tpu.memory_space<vmem>>, vector<8x16x4xbf16>
    %7 = vector.shape_cast %6 : vector<8x16x4xbf16> to vector<128x4xbf16>
    %c0_15 = arith.constant 0 : index
    %c0_16 = arith.constant 0 : index
    %c0_17 = arith.constant 0 : index
    %8 = vector.load %arg4[%c0_15, %c0_16, %c0_17] : memref<9x4x128xbf16, #tpu.memory_space<vmem>>, vector<1x4x128xbf16>
    %9 = vector.shape_cast %8 : vector<1x4x128xbf16> to vector<4x128xbf16>
    %cst = arith.constant dense<0.000000e+00> : vector<128x128xf32>
    %10 = tpu.matmul %7, %9, %cst {dimension_numbers = #tpu.dot_dimension_numbers<[1], [0], [0], [1], [0, 0, 1, 1], [], []>} : vector<128x4xbf16>, vector<4x128xbf16>, vector<128x128xf32> -> vector<128x128xf32>
    %c0_18 = arith.constant 0 : index
    %c1 = arith.constant 1 : index
    %c0_19 = arith.constant 0 : index
    %11 = vector.load %arg8[%c0_18, %c1, %c0_19] : memref<10x18x4xbf16, #tpu.memory_space<vmem>>, vector<8x16x4xbf16>
    %12 = vector.shape_cast %11 : vector<8x16x4xbf16> to vector<128x4xbf16>
    %c1_20 = arith.constant 1 : index
    %c0_21 = arith.constant 0 : index
    %c0_22 = arith.constant 0 : index
    %13 = vector.load %arg4[%c1_20, %c0_21, %c0_22] : memref<9x4x128xbf16, #tpu.memory_space<vmem>>, vector<1x4x128xbf16>
    %14 = vector.shape_cast %13 : vector<1x4x128xbf16> to vector<4x128xbf16>
    %cst_23 = arith.constant dense<0.000000e+00> : vector<128x128xf32>
    %15 = tpu.matmul %12, %14, %cst_23 {dimension_numbers = #tpu.dot_dimension_numbers<[1], [0], [0], [1], [0, 0, 1, 1], [], []>} : vector<128x4xbf16>, vector<4x128xbf16>, vector<128x128xf32> -> vector<128x128xf32>
    %16 = arith.addf %10, %15 : vector<128x128xf32>
    %c0_24 = arith.constant 0 : index
    %c2 = arith.constant 2 : index
    %c0_25 = arith.constant 0 : index
    %17 = vector.load %arg8[%c0_24, %c2, %c0_25] : memref<10x18x4xbf16, #tpu.memory_space<vmem>>, vector<8x16x4xbf16>
    %18 = vector.shape_cast %17 : vector<8x16x4xbf16> to vector<128x4xbf16>
    %c2_26 = arith.constant 2 : index
    %c0_27 = arith.constant 0 : index
    %c0_28 = arith.constant 0 : index
    %19 = vector.load %arg4[%c2_26, %c0_27, %c0_28] : memref<9x4x128xbf16, #tpu.memory_space<vmem>>, vector<1x4x128xbf16>
    %20 = vector.shape_cast %19 : vector<1x4x128xbf16> to vector<4x128xbf16>
    %cst_29 = arith.constant dense<0.000000e+00> : vector<128x128xf32>
    %21 = tpu.matmul %18, %20, %cst_29 {dimension_numbers = #tpu.dot_dimension_numbers<[1], [0], [0], [1], [0, 0, 1, 1], [], []>} : vector<128x4xbf16>, vector<4x128xbf16>, vector<128x128xf32> -> vector<128x128xf32>
    %22 = arith.addf %16, %21 : vector<128x128xf32>
    %c1_30 = arith.constant 1 : index
    %c0_31 = arith.constant 0 : index
    %c0_32 = arith.constant 0 : index
    %23 = vector.load %arg8[%c1_30, %c0_31, %c0_32] : memref<10x18x4xbf16, #tpu.memory_space<vmem>>, vector<8x16x4xbf16>
    %24 = vector.shape_cast %23 : vector<8x16x4xbf16> to vector<128x4xbf16>
    %c3 = arith.constant 3 : index
    %c0_33 = arith.constant 0 : index
    %c0_34 = arith.constant 0 : index
    %25 = vector.load %arg4[%c3, %c0_33, %c0_34] : memref<9x4x128xbf16, #tpu.memory_space<vmem>>, vector<1x4x128xbf16>
    %26 = vector.shape_cast %25 : vector<1x4x128xbf16> to vector<4x128xbf16>
    %cst_35 = arith.constant dense<0.000000e+00> : vector<128x128xf32>
    %27 = tpu.matmul %24, %26, %cst_35 {dimension_numbers = #tpu.dot_dimension_numbers<[1], [0], [0], [1], [0, 0, 1, 1], [], []>} : vector<128x4xbf16>, vector<4x128xbf16>, vector<128x128xf32> -> vector<128x128xf32>
    %28 = arith.addf %22, %27 : vector<128x128xf32>
    %c1_36 = arith.constant 1 : index
    %c1_37 = arith.constant 1 : index
    %c0_38 = arith.constant 0 : index
    %29 = vector.load %arg8[%c1_36, %c1_37, %c0_38] : memref<10x18x4xbf16, #tpu.memory_space<vmem>>, vector<8x16x4xbf16>
    %30 = vector.shape_cast %29 : vector<8x16x4xbf16> to vector<128x4xbf16>
    %c4 = arith.constant 4 : index
    %c0_39 = arith.constant 0 : index
    %c0_40 = arith.constant 0 : index
    %31 = vector.load %arg4[%c4, %c0_39, %c0_40] : memref<9x4x128xbf16, #tpu.memory_space<vmem>>, vector<1x4x128xbf16>
    %32 = vector.shape_cast %31 : vector<1x4x128xbf16> to vector<4x128xbf16>
    %cst_41 = arith.constant dense<0.000000e+00> : vector<128x128xf32>
    %33 = tpu.matmul %30, %32, %cst_41 {dimension_numbers = #tpu.dot_dimension_numbers<[1], [0], [0], [1], [0, 0, 1, 1], [], []>} : vector<128x4xbf16>, vector<4x128xbf16>, vector<128x128xf32> -> vector<128x128xf32>
    %34 = arith.addf %28, %33 : vector<128x128xf32>
    %c1_42 = arith.constant 1 : index
    %c2_43 = arith.constant 2 : index
    %c0_44 = arith.constant 0 : index
    %35 = vector.load %arg8[%c1_42, %c2_43, %c0_44] : memref<10x18x4xbf16, #tpu.memory_space<vmem>>, vector<8x16x4xbf16>
    %36 = vector.shape_cast %35 : vector<8x16x4xbf16> to vector<128x4xbf16>
    %c5 = arith.constant 5 : index
    %c0_45 = arith.constant 0 : index
    %c0_46 = arith.constant 0 : index
    %37 = vector.load %arg4[%c5, %c0_45, %c0_46] : memref<9x4x128xbf16, #tpu.memory_space<vmem>>, vector<1x4x128xbf16>
    %38 = vector.shape_cast %37 : vector<1x4x128xbf16> to vector<4x128xbf16>
    %cst_47 = arith.constant dense<0.000000e+00> : vector<128x128xf32>
    %39 = tpu.matmul %36, %38, %cst_47 {dimension_numbers = #tpu.dot_dimension_numbers<[1], [0], [0], [1], [0, 0, 1, 1], [], []>} : vector<128x4xbf16>, vector<4x128xbf16>, vector<128x128xf32> -> vector<128x128xf32>
    %40 = arith.addf %34, %39 : vector<128x128xf32>
    %c2_48 = arith.constant 2 : index
    %c0_49 = arith.constant 0 : index
    %c0_50 = arith.constant 0 : index
    %41 = vector.load %arg8[%c2_48, %c0_49, %c0_50] : memref<10x18x4xbf16, #tpu.memory_space<vmem>>, vector<8x16x4xbf16>
    %42 = vector.shape_cast %41 : vector<8x16x4xbf16> to vector<128x4xbf16>
    %c6 = arith.constant 6 : index
    %c0_51 = arith.constant 0 : index
    %c0_52 = arith.constant 0 : index
    %43 = vector.load %arg4[%c6, %c0_51, %c0_52] : memref<9x4x128xbf16, #tpu.memory_space<vmem>>, vector<1x4x128xbf16>
    %44 = vector.shape_cast %43 : vector<1x4x128xbf16> to vector<4x128xbf16>
    %cst_53 = arith.constant dense<0.000000e+00> : vector<128x128xf32>
    %45 = tpu.matmul %42, %44, %cst_53 {dimension_numbers = #tpu.dot_dimension_numbers<[1], [0], [0], [1], [0, 0, 1, 1], [], []>} : vector<128x4xbf16>, vector<4x128xbf16>, vector<128x128xf32> -> vector<128x128xf32>
    %46 = arith.addf %40, %45 : vector<128x128xf32>
    %c2_54 = arith.constant 2 : index
    %c1_55 = arith.constant 1 : index
    %c0_56 = arith.constant 0 : index
    %47 = vector.load %arg8[%c2_54, %c1_55, %c0_56] : memref<10x18x4xbf16, #tpu.memory_space<vmem>>, vector<8x16x4xbf16>
    %48 = vector.shape_cast %47 : vector<8x16x4xbf16> to vector<128x4xbf16>
    %c7 = arith.constant 7 : index
    %c0_57 = arith.constant 0 : index
    %c0_58 = arith.constant 0 : index
    %49 = vector.load %arg4[%c7, %c0_57, %c0_58] : memref<9x4x128xbf16, #tpu.memory_space<vmem>>, vector<1x4x128xbf16>
    %50 = vector.shape_cast %49 : vector<1x4x128xbf16> to vector<4x128xbf16>
    %cst_59 = arith.constant dense<0.000000e+00> : vector<128x128xf32>
    %51 = tpu.matmul %48, %50, %cst_59 {dimension_numbers = #tpu.dot_dimension_numbers<[1], [0], [0], [1], [0, 0, 1, 1], [], []>} : vector<128x4xbf16>, vector<4x128xbf16>, vector<128x128xf32> -> vector<128x128xf32>
    %52 = arith.addf %46, %51 : vector<128x128xf32>
    %c2_60 = arith.constant 2 : index
    %c2_61 = arith.constant 2 : index
    %c0_62 = arith.constant 0 : index
    %53 = vector.load %arg8[%c2_60, %c2_61, %c0_62] : memref<10x18x4xbf16, #tpu.memory_space<vmem>>, vector<8x16x4xbf16>
    %54 = vector.shape_cast %53 : vector<8x16x4xbf16> to vector<128x4xbf16>
    %c8_63 = arith.constant 8 : index
    %c0_64 = arith.constant 0 : index
    %c0_65 = arith.constant 0 : index
    %55 = vector.load %arg4[%c8_63, %c0_64, %c0_65] : memref<9x4x128xbf16, #tpu.memory_space<vmem>>, vector<1x4x128xbf16>
    %56 = vector.shape_cast %55 : vector<1x4x128xbf16> to vector<4x128xbf16>
    %cst_66 = arith.constant dense<0.000000e+00> : vector<128x128xf32>
    %57 = tpu.matmul %54, %56, %cst_66 {dimension_numbers = #tpu.dot_dimension_numbers<[1], [0], [0], [1], [0, 0, 1, 1], [], []>} : vector<128x4xbf16>, vector<4x128xbf16>, vector<128x128xf32> -> vector<128x128xf32>
    %58 = arith.addf %52, %57 : vector<128x128xf32>
    %c0_67 = arith.constant 0 : index
    %c0_68 = arith.constant 0 : index
    %59 = vector.load %arg5[%c0_67, %c0_68] : memref<1x128xf32, #tpu.memory_space<vmem>>, vector<1x128xf32>
    %c0_69 = arith.constant 0 : index
    %c0_70 = arith.constant 0 : index
    %60 = vector.load %arg6[%c0_69, %c0_70] : memref<1x128xf32, #tpu.memory_space<vmem>>, vector<1x128xf32>
    %61 = vector.extract_strided_slice %58 {offsets = [0, 0], sizes = [16, 128], strides = [1, 1]} : vector<128x128xf32> to vector<16x128xf32>
    %62 = vector.extract_strided_slice %58 {offsets = [16, 0], sizes = [16, 128], strides = [1, 1]} : vector<128x128xf32> to vector<16x128xf32>
    %63 = vector.broadcast %59 : vector<1x128xf32> to vector<16x128xf32>
    %64 = arith.mulf %61, %63 : vector<16x128xf32>
    %65 = vector.broadcast %60 : vector<1x128xf32> to vector<16x128xf32>
    %66 = arith.addf %64, %65 : vector<16x128xf32>
    %cst_71 = arith.constant 0.000000e+00 : f32
    %67 = vector.broadcast %cst_71 : f32 to vector<16x128xf32>
    %68 = arith.maximumf %66, %67 : vector<16x128xf32>
    %69 = vector.broadcast %59 : vector<1x128xf32> to vector<16x128xf32>
    %70 = arith.mulf %62, %69 : vector<16x128xf32>
    %71 = vector.broadcast %60 : vector<1x128xf32> to vector<16x128xf32>
    %72 = arith.addf %70, %71 : vector<16x128xf32>
    %cst_72 = arith.constant 0.000000e+00 : f32
    %73 = vector.broadcast %cst_72 : f32 to vector<16x128xf32>
    %74 = arith.maximumf %72, %73 : vector<16x128xf32>
    %75 = arith.maximumf %68, %74 : vector<16x128xf32>
    %76 = vector.extract_strided_slice %58 {offsets = [32, 0], sizes = [16, 128], strides = [1, 1]} : vector<128x128xf32> to vector<16x128xf32>
    %77 = vector.extract_strided_slice %58 {offsets = [48, 0], sizes = [16, 128], strides = [1, 1]} : vector<128x128xf32> to vector<16x128xf32>
    %78 = vector.broadcast %59 : vector<1x128xf32> to vector<16x128xf32>
    %79 = arith.mulf %76, %78 : vector<16x128xf32>
    %80 = vector.broadcast %60 : vector<1x128xf32> to vector<16x128xf32>
    %81 = arith.addf %79, %80 : vector<16x128xf32>
    %cst_73 = arith.constant 0.000000e+00 : f32
    %82 = vector.broadcast %cst_73 : f32 to vector<16x128xf32>
    %83 = arith.maximumf %81, %82 : vector<16x128xf32>
    %84 = vector.broadcast %59 : vector<1x128xf32> to vector<16x128xf32>
    %85 = arith.mulf %77, %84 : vector<16x128xf32>
    %86 = vector.broadcast %60 : vector<1x128xf32> to vector<16x128xf32>
    %87 = arith.addf %85, %86 : vector<16x128xf32>
    %cst_74 = arith.constant 0.000000e+00 : f32
    %88 = vector.broadcast %cst_74 : f32 to vector<16x128xf32>
    %89 = arith.maximumf %87, %88 : vector<16x128xf32>
    %90 = arith.maximumf %83, %89 : vector<16x128xf32>
    %91 = vector.extract_strided_slice %58 {offsets = [64, 0], sizes = [16, 128], strides = [1, 1]} : vector<128x128xf32> to vector<16x128xf32>
    %92 = vector.extract_strided_slice %58 {offsets = [80, 0], sizes = [16, 128], strides = [1, 1]} : vector<128x128xf32> to vector<16x128xf32>
    %93 = vector.broadcast %59 : vector<1x128xf32> to vector<16x128xf32>
    %94 = arith.mulf %91, %93 : vector<16x128xf32>
    %95 = vector.broadcast %60 : vector<1x128xf32> to vector<16x128xf32>
    %96 = arith.addf %94, %95 : vector<16x128xf32>
    %cst_75 = arith.constant 0.000000e+00 : f32
    %97 = vector.broadcast %cst_75 : f32 to vector<16x128xf32>
    %98 = arith.maximumf %96, %97 : vector<16x128xf32>
    %99 = vector.broadcast %59 : vector<1x128xf32> to vector<16x128xf32>
    %100 = arith.mulf %92, %99 : vector<16x128xf32>
    %101 = vector.broadcast %60 : vector<1x128xf32> to vector<16x128xf32>
    %102 = arith.addf %100, %101 : vector<16x128xf32>
    %cst_76 = arith.constant 0.000000e+00 : f32
    %103 = vector.broadcast %cst_76 : f32 to vector<16x128xf32>
    %104 = arith.maximumf %102, %103 : vector<16x128xf32>
    %105 = arith.maximumf %98, %104 : vector<16x128xf32>
    %106 = vector.extract_strided_slice %58 {offsets = [96, 0], sizes = [16, 128], strides = [1, 1]} : vector<128x128xf32> to vector<16x128xf32>
    %107 = vector.extract_strided_slice %58 {offsets = [112, 0], sizes = [16, 128], strides = [1, 1]} : vector<128x128xf32> to vector<16x128xf32>
    %108 = vector.broadcast %59 : vector<1x128xf32> to vector<16x128xf32>
    %109 = arith.mulf %106, %108 : vector<16x128xf32>
    %110 = vector.broadcast %60 : vector<1x128xf32> to vector<16x128xf32>
    %111 = arith.addf %109, %110 : vector<16x128xf32>
    %cst_77 = arith.constant 0.000000e+00 : f32
    %112 = vector.broadcast %cst_77 : f32 to vector<16x128xf32>
    %113 = arith.maximumf %111, %112 : vector<16x128xf32>
    %114 = vector.broadcast %59 : vector<1x128xf32> to vector<16x128xf32>
    %115 = arith.mulf %107, %114 : vector<16x128xf32>
    %116 = vector.broadcast %60 : vector<1x128xf32> to vector<16x128xf32>
    %117 = arith.addf %115, %116 : vector<16x128xf32>
    %cst_78 = arith.constant 0.000000e+00 : f32
    %118 = vector.broadcast %cst_78 : f32 to vector<16x128xf32>
    %119 = arith.maximumf %117, %118 : vector<16x128xf32>
    %120 = arith.maximumf %113, %119 : vector<16x128xf32>
    %121 = tpu.concatenate %75, %90, %105, %120 in 0 : vector<16x128xf32>, vector<16x128xf32>, vector<16x128xf32>, vector<16x128xf32> -> vector<64x128xf32>
    %c0_79 = arith.constant 0 : index
    %c0_80 = arith.constant 0 : index
    %122 = vector.load %arg9[%c0_79, %c0_80] : memref<64x128xf32, #tpu.memory_space<vmem>>, vector<64x128xf32>
    tpu.vector_store %arg9[%c0_79, %c0_80], %121 {strides = array<i32>} : memref<64x128xf32, #tpu.memory_space<vmem>>, vector<64x128xf32>,
    %c0_81 = arith.constant 0 : index
    %c0_82 = arith.constant 0 : index
    %123 = tpu.strided_load %arg9[%c0_81, %c0_82] {strides = array<i32: 2, 1>} : memref<64x128xf32, #tpu.memory_space<vmem>>, vector<32x128xf32>
    %c1_83 = arith.constant 1 : index
    %c0_84 = arith.constant 0 : index
    %124 = tpu.strided_load %arg9[%c1_83, %c0_84] {strides = array<i32: 2, 1>} : memref<64x128xf32, #tpu.memory_space<vmem>>, vector<32x128xf32>
    %125 = arith.maximumf %123, %124 : vector<32x128xf32>
    %c0_85 = arith.constant 0 : index
    %c0_86 = arith.constant 0 : index
    %c0_87 = arith.constant 0 : index
    %c0_88 = arith.constant 0 : index
    %126 = vector.load %arg7[%c0_85, %c0_86, %c0_87, %c0_88] : memref<1x1x32x128xf32, #tpu.memory_space<vmem>>, vector<1x1x32x128xf32>
    %127 = vector.shape_cast %126 : vector<1x1x32x128xf32> to vector<32x128xf32>
    %128 = vector.shape_cast %125 : vector<32x128xf32> to vector<1x1x32x128xf32>
    tpu.vector_store %arg7[%c0_85, %c0_86, %c0_87, %c0_88], %128 {strides = array<i32>} : memref<1x1x32x128xf32, #tpu.memory_space<vmem>>, vector<1x1x32x128xf32>,
    return
  }
  func.func @transform_0(%arg0: i32, %arg1: i32) -> (i32, i32, i32, i32) {
    %c0_i32 = arith.constant 0 : i32
    %c0_i32_0 = arith.constant 0 : i32
    %c0_i32_1 = arith.constant 0 : i32
    return %arg0, %arg1, %c0_i32, %c0_i32_0 : i32, i32, i32, i32
  }
  func.func @transform_1(%arg0: i32, %arg1: i32) -> (i32, i32, i32, i32) {
    %c1_i32 = arith.constant 1 : i32
    %0 = arith.addi %arg1, %c1_i32 : i32
    %c4_i32 = arith.constant 4 : i32
    %1 = arith.muli %0, %c4_i32 : i32
    %c0_i32 = arith.constant 0 : i32
    %c0_i32_0 = arith.constant 0 : i32
    %c0_i32_1 = arith.constant 0 : i32
    return %arg0, %1, %c0_i32, %c0_i32_0 : i32, i32, i32, i32
  }
  func.func @transform_2(%arg0: i32, %arg1: i32) -> (i32, i32, i32) {
    %c0_i32 = arith.constant 0 : i32
    %c0_i32_0 = arith.constant 0 : i32
    %c0_i32_1 = arith.constant 0 : i32
    %c0_i32_2 = arith.constant 0 : i32
    return %c0_i32, %c0_i32_0, %c0_i32_1 : i32, i32, i32
  }
  func.func @transform_3(%arg0: i32, %arg1: i32) -> (i32, i32) {
    %c0_i32 = arith.constant 0 : i32
    %c0_i32_0 = arith.constant 0 : i32
    %c0_i32_1 = arith.constant 0 : i32
    return %c0_i32, %c0_i32_0 : i32, i32
  }
  func.func @transform_4(%arg0: i32, %arg1: i32) -> (i32, i32) {
    %c0_i32 = arith.constant 0 : i32
    %c0_i32_0 = arith.constant 0 : i32
    %c0_i32_1 = arith.constant 0 : i32
    return %c0_i32, %c0_i32_0 : i32, i32
  }
  func.func @transform_5(%arg0: i32, %arg1: i32) -> (i32, i32, i32, i32) {
    %c0_i32 = arith.constant 0 : i32
    %c0_i32_0 = arith.constant 0 : i32
    %c0_i32_1 = arith.constant 0 : i32
    return %arg0, %arg1, %c0_i32, %c0_i32_0 : i32, i32, i32, i32
  }
}

</mosaic_0001>

<llo_original>
// kernel: tpu_custom_call.1
$region0: #{tpu_custom_call.1}
  #allocation0 [shape = 'u32[]', space=smem, size = 0x4, offset = 0x4, fixed_abs, tag = 'smem constant byte address 0x4 - core index']
  #allocation1 [shape = 'u32[144,128]{1,0:T(1,128)}', space=vmem, size = 0x12000, scoped, tag = 'internal scratch']
  #allocation2 [shape = 'bf16[10,18,4]{2,1,0:T(8,128)(2,1)}', space=vmem, size = 0xf000, scoped, tag = 'scratch operand']
  #allocation3 [shape = 'f32[64,128]{1,0:T(8,128)}', space=vmem, size = 0x8000, scoped, tag = 'scratch operand']
  %s0 = inlined_call_operand.vmem [shape: bf16[2,18,18,4], index: 0, kind: input, shape index: {}]
  %s1 = inlined_call_operand.vmem [shape: bf16[2,18,18,4], index: 1, kind: input, shape index: {}]
  %s2 = inlined_call_operand.vmem [shape: bf16[9,4,128], index: 2, kind: input, shape index: {}]
  %s3 = inlined_call_operand.vmem [shape: f32[1,128], index: 3, kind: input, shape index: {}]
  %s4 = inlined_call_operand.vmem [shape: f32[1,128], index: 4, kind: input, shape index: {}]
  %s5 = inlined_call_operand.hbm [shape: f32[2,2,32,128], index: 5, kind: output, shape index: {}]
  %s6 = sld [smem:[#allocation0]]
  $region53: #{tpu_custom_call.1} parent=0
    _
  %s8 = ssub.s32 1, %s6
  %s9 = scalar_select 0, %s8, %s6
  $region1: #{tpu_custom_call.1} parent=0
    #allocation4 [shape = 'u8[32768]{0}', space=vmem, size = 0x8000, scoped, tag = 'output window, operand 0']
    #allocation5 [shape = 's32[2]{0}', space=sflag, size = 0x8, scoped, tag = 'scoped memory for tpu_custom_call.1']
    %10 = vsyncpa [#allocation5], 0
    %s11 = scalar_lea.sflag [#allocation5], 1
    %12 = vsyncpa %s11, 0
    loop: start=0, step=1, limit=6
    $region2: #{tpu_custom_call.1} parent=1 // loop_pre_header
      _
    $region3: #{tpu_custom_call.1} parent=1 // loop_header
      %s14 = sphi 0, %s18
      %p15 = scmp.ge.s32.totalorder %s14, 6
      %s21 = sphi 0, %s33
      %s22 = sphi 0, %s29
      %s23 = sphi 0, %s21
      %s24 = sphi 0, %s22
      %s25 = sphi 0, %s23
      %s26 = sphi 0, %s24
      %s38 = sphi 0, %s40
      %s41 = sphi 0, %s38
      %s42 = sphi 0, %s41
      %s58 = sphi 0, %s42
      %s70 = sphi 0, %s72
      %s73 = sphi 0, %s70
      %s74 = sphi 0, %s73
      %s90 = sphi 0, %s74
      %s94 = sphi 0, %s94
      %s96 = sphi 0, %s94
      %s97 = sphi 0, %s96
      %s111 = sphi 0, %s97
      %s115 = sphi 0, %s115
      %s117 = sphi 0, %s115
      %s118 = sphi 0, %s117
      %s132 = sphi 0, %s118
      %s136 = sphi 0, %s136
      %s138 = sphi 0, %s136
      %s139 = sphi 0, %s138
      %s153 = sphi 0, %s139
      %s161 = sphi 0, %s163
      %s164 = sphi 0, %s161
      %s165 = sphi 0, %s164
      %s181 = sphi 0, %s165
    $region4: #{tpu_custom_call.1} parent=1 // loop_header_branch
      %17 = sbr.rel (%p15) target = $region8
    $region5: #{tpu_custom_call.1} parent=1 // loop_body
      %s19 = ssub.s32 %s14, 1
      %s20 = ssub.s32 %s14, 2
      %s27 = sadd.s32 1, %s22
      %p28 = scmp.ge.s32.totalorder %s27, 2
      %s29 = scalar_select %p28, 0, %s27
      %s30 = sadd.s32 1, %s21
      %s31 = scalar_select %p28, %s30, %s21
      %p32 = scmp.ge.s32.totalorder %s31, 2
      %s33 = scalar_select %p32, 0, %s31
      %s34 = ssub.s32 %s21, %s33
      %s35 = ssub.s32 %s22, %s29
      %s36 = sor.u32 %s34, %s35
      %p37 = scmp.eq.s32.totalorder %s36, 0
      %s39 = sadd.s32 %s38, 1
      %s40 = scalar_select %p37, %s38, %s39
      %p43 = pneg %p37
      %p44 = scmp.eq.s32.totalorder %s14, 3
      %p45 = por %p43, %p44
      %p46 = scmp.ne.s32.totalorder %s38, %s41
      %p47 = scmp.eq.s32.totalorder %s14, 0
      %p48 = por %p46, %p47
      %p49 = scmp.ne.s32.totalorder %s38, %s41
      %p50 = scmp.eq.s32.totalorder %s19, 3
      %p51 = por %p49, %p50
      %p52 = scmp.ne.s32.totalorder %s41, %s42
      %p53 = scmp.eq.s32.totalorder %s19, 0
      %p54 = por %p52, %p53
      %p55 = scmp.ne.s32.totalorder %s41, %s42
      %p56 = scmp.eq.s32.totalorder %s20, 3
      %p57 = por %p55, %p56
      %p59 = scmp.ne.s32.totalorder %s42, %s58
      %p60 = scmp.eq.s32.totalorder %s20, 0
      %p61 = por %p59, %p60
      %s62 = sadd.s32 %s22, 1
      %s63 = smul.u32 %s62, 4
      %s64 = sadd.s32 %s29, 1
      %s65 = smul.u32 %s64, 4
      %s66 = ssub.s32 %s21, %s33
      %s67 = ssub.s32 %s63, %s65
      %s68 = sor.u32 %s66, %s67
      %p69 = scmp.eq.s32.totalorder %s68, 0
      %s71 = sadd.s32 %s70, 1
      %s72 = scalar_select %p69, %s70, %s71
      %p75 = pneg %p69
      %p76 = scmp.eq.s32.totalorder %s14, 3
      %p77 = por %p75, %p76
      %p78 = scmp.ne.s32.totalorder %s70, %s73
      %p79 = scmp.eq.s32.totalorder %s14, 0
      %p80 = por %p78, %p79
      %p81 = scmp.ne.s32.totalorder %s70, %s73
      %p82 = scmp.eq.s32.totalorder %s19, 3
      %p83 = por %p81, %p82
      %p84 = scmp.ne.s32.totalorder %s73, %s74
      %p85 = scmp.eq.s32.totalorder %s19, 0
      %p86 = por %p84, %p85
      %p87 = scmp.ne.s32.totalorder %s73, %s74
      %p88 = scmp.eq.s32.totalorder %s20, 3
      %p89 = por %p87, %p88
      %p91 = scmp.ne.s32.totalorder %s74, %s90
      %p92 = scmp.eq.s32.totalorder %s20, 0
      %p93 = por %p91, %p92
      %s95 = sadd.s32 %s94, 1
      %p98 = scmp.eq.s32.totalorder %s14, 3
      %p99 = scmp.ne.s32.totalorder %s94, %s96
      %p100 = scmp.eq.s32.totalorder %s14, 0
      %p101 = por %p99, %p100
      %p102 = scmp.ne.s32.totalorder %s94, %s96
      %p103 = scmp.eq.s32.totalorder %s19, 3
      %p104 = por %p102, %p103
      %p105 = scmp.ne.s32.totalorder %s96, %s97
      %p106 = scmp.eq.s32.totalorder %s19, 0
      %p107 = por %p105, %p106
      %p108 = scmp.ne.s32.totalorder %s96, %s97
      %p109 = scmp.eq.s32.totalorder %s20, 3
      %p110 = por %p108, %p109
      %p112 = scmp.ne.s32.totalorder %s97, %s111
      %p113 = scmp.eq.s32.totalorder %s20, 0
      %p114 = por %p112, %p113
      %s116 = sadd.s32 %s115, 1
      %p119 = scmp.eq.s32.totalorder %s14, 3
      %p120 = scmp.ne.s32.totalorder %s115, %s117
      %p121 = scmp.eq.s32.totalorder %s14, 0
      %p122 = por %p120, %p121
      %p123 = scmp.ne.s32.totalorder %s115, %s117
      %p124 = scmp.eq.s32.totalorder %s19, 3
      %p125 = por %p123, %p124
      %p126 = scmp.ne.s32.totalorder %s117, %s118
      %p127 = scmp.eq.s32.totalorder %s19, 0
      %p128 = por %p126, %p127
      %p129 = scmp.ne.s32.totalorder %s117, %s118
      %p130 = scmp.eq.s32.totalorder %s20, 3
      %p131 = por %p129, %p130
      %p133 = scmp.ne.s32.totalorder %s118, %s132
      %p134 = scmp.eq.s32.totalorder %s20, 0
      %p135 = por %p133, %p134
      %s137 = sadd.s32 %s136, 1
      %p140 = scmp.eq.s32.totalorder %s14, 3
      %p141 = scmp.ne.s32.totalorder %s136, %s138
      %p142 = scmp.eq.s32.totalorder %s14, 0
      %p143 = por %p141, %p142
      %p144 = scmp.ne.s32.totalorder %s136, %s138
      %p145 = scmp.eq.s32.totalorder %s19, 3
      %p146 = por %p144, %p145
      %p147 = scmp.ne.s32.totalorder %s138, %s139
      %p148 = scmp.eq.s32.totalorder %s19, 0
      %p149 = por %p147, %p148
      %p150 = scmp.ne.s32.totalorder %s138, %s139
      %p151 = scmp.eq.s32.totalorder %s20, 3
      %p152 = por %p150, %p151
      %p154 = scmp.ne.s32.totalorder %s139, %s153
      %p155 = scmp.eq.s32.totalorder %s20, 0
      %p156 = por %p154, %p155
      %s157 = ssub.s32 %s21, %s33
      %s158 = ssub.s32 %s22, %s29
      %s159 = sor.u32 %s157, %s158
      %p160 = scmp.eq.s32.totalorder %s159, 0
      %s162 = sadd.s32 %s161, 1
      %s163 = scalar_select %p160, %s161, %s162
      %p166 = pneg %p160
      %p167 = scmp.eq.s32.totalorder %s14, 3
      %p168 = por %p166, %p167
      %p169 = scmp.ne.s32.totalorder %s161, %s164
      %p170 = scmp.eq.s32.totalorder %s14, 0
      %p171 = por %p169, %p170
      %p172 = scmp.ne.s32.totalorder %s161, %s164
      %p173 = scmp.eq.s32.totalorder %s19, 3
      %p174 = por %p172, %p173
      %p175 = scmp.ne.s32.totalorder %s164, %s165
      %p176 = scmp.eq.s32.totalorder %s19, 0
      %p177 = por %p175, %p176
      %p178 = scmp.ne.s32.totalorder %s164, %s165
      %p179 = scmp.eq.s32.totalorder %s20, 3
      %p180 = por %p178, %p179
      %p182 = scmp.ne.s32.totalorder %s165, %s181
      %p183 = scmp.eq.s32.totalorder %s20, 0
      %p184 = por %p182, %p183
      %p185 = scmp.le.s32.totalorder 1, %s14
      %p186 = scmp.lt.s32.totalorder %s14, 5
      %p187 = pnand %p185, %p186
      %p188 = pneg %p187
      // Predicated region
      $region9: #{tpu_custom_call.1} parent=5 // pred_check
        _
      $region10: #{tpu_custom_call.1} parent=5 // pred_check_branch
        %190 = sbr.rel (%p187) target = $region12
      $region11: #{tpu_custom_call.1} parent=5 // pred_region
        %s191 = ssub.s32 %s14, 1
        // Predicated region
        $region13: #{tpu_custom_call.1} parent=11 // pred_check
          %p192 = pneg %p107
        $region14: #{tpu_custom_call.1} parent=11 // pred_check_branch
          %194 = sbr.rel (%p192) target = $region16
        $region15: #{tpu_custom_call.1} parent=11 // pred_region
          _
        $region16: #{tpu_custom_call.1} parent=11 // pred_fallthru
          _
        // Predicated region
        $region17: #{tpu_custom_call.1} parent=11 // pred_check
          %p195 = pneg %p128
        $region18: #{tpu_custom_call.1} parent=11 // pred_check_branch
          %197 = sbr.rel (%p195) target = $region20
        $region19: #{tpu_custom_call.1} parent=11 // pred_region
          _
        $region20: #{tpu_custom_call.1} parent=11 // pred_fallthru
          _
        // Predicated region
        $region21: #{tpu_custom_call.1} parent=11 // pred_check
          %p198 = pneg %p149
        $region22: #{tpu_custom_call.1} parent=11 // pred_check_branch
          %200 = sbr.rel (%p198) target = $region24
        $region23: #{tpu_custom_call.1} parent=11 // pred_region
          _
        $region24: #{tpu_custom_call.1} parent=11 // pred_fallthru
          _
      $region12: #{tpu_custom_call.1} parent=5 // pred_fallthru
        _
      %p201 = scmp.lt.s32.totalorder %s14, 4
      // Predicated region
      $region25: #{tpu_custom_call.1} parent=5 // pred_check
        %p202 = pneg %p201
      $region26: #{tpu_custom_call.1} parent=5 // pred_check_branch
        %204 = sbr.rel (%p202) target = $region28
      $region27: #{tpu_custom_call.1} parent=5 // pred_region
        // Predicated region
        $region29: #{tpu_custom_call.1} parent=27 // pred_check
          %p205 = pneg %p48
        $region30: #{tpu_custom_call.1} parent=27 // pred_check_branch
          %207 = sbr.rel (%p205) target = $region32
        $region31: #{tpu_custom_call.1} parent=27 // pred_region
          %s208 = smul.u32 8, %s22
          %s209 = ssub.s32 18, %s208
          %p210 = scmp.lt.s32.totalorder %s209, 8
          %s211 = scalar_select %p210, %s209, 8
          %s212 = smul.u32 64, %s211
          %s213 = smul.u32 %s212, 3
          %p214 = scmp.lt.s32.totalorder %s21, 1
          %s215 = scalar_select %p214, %s21, 1
          %p216 = scmp.lt.s32.totalorder %s208, 17
          %s217 = scalar_select %p216, %s208, 17
          %s218 = smul.addr %s217, 3
          %s219 = smul.addr %s215, 54
          %s220 = sadd.s32 %s218, %s219
          %s221 = smul.addr %s220, 4
          %s222 = scalar_lea.vmem %s0, %s221
          %s223 = smul.u32 8, %s22
          %s224 = ssub.s32 18, %s223
          %p225 = scmp.lt.s32.totalorder %s224, 8
          %s226 = scalar_select %p225, %s224, 8
          %s227 = smul.u32 64, %s226
          %s228 = smul.u32 %s227, 3
        $region32: #{tpu_custom_call.1} parent=27 // pred_fallthru
          _
        // Predicated region
        $region33: #{tpu_custom_call.1} parent=27 // pred_check
          %p229 = pneg %p80
        $region34: #{tpu_custom_call.1} parent=27 // pred_check_branch
          %231 = sbr.rel (%p229) target = $region36
        $region35: #{tpu_custom_call.1} parent=27 // pred_region
          %s232 = sadd.s32 %s22, 1
          %s233 = smul.u32 %s232, 4
          %s234 = smul.u32 2, %s233
          %p235 = scmp.lt.s32.totalorder %s21, 1
          %s236 = scalar_select %p235, %s21, 1
          %p237 = scmp.lt.s32.totalorder %s234, 17
          %s238 = scalar_select %p237, %s234, 17
          %s239 = smul.addr %s238, 3
          %s240 = smul.addr %s236, 54
          %s241 = sadd.s32 %s239, %s240
          %s242 = smul.addr %s241, 4
          %s243 = scalar_lea.vmem %s1, %s242
          %s244 = sadd.s32 %s22, 1
          %s245 = smul.u32 %s244, 4
          %s246 = smul.u32 2, %s245
        $region36: #{tpu_custom_call.1} parent=27 // pred_fallthru
          _
      $region28: #{tpu_custom_call.1} parent=5 // pred_fallthru
        _
      %p247 = scmp.le.s32.totalorder 1, %s14
      %p248 = scmp.lt.s32.totalorder %s14, 5
      %p249 = pnand %p247, %p248
      %p250 = pneg %p249
      // Predicated region
      $region37: #{tpu_custom_call.1} parent=5 // pred_check
        _
      $region38: #{tpu_custom_call.1} parent=5 // pred_check_branch
        %252 = sbr.rel (%p249) target = $region40
      $region39: #{tpu_custom_call.1} parent=5 // pred_region
        %s253 = ssub.s32 %s14, 1
        %s254 = smul.u32 8, %s24
        %s255 = ssub.s32 18, %s254
        %p256 = scmp.lt.s32.totalorder %s255, 8
        %s257 = scalar_select %p256, %s255, 8
        %s258 = smul.u32 64, %s257
        %s259 = smul.u32 %s258, 3
        %p260 = scmp.lt.s32.totalorder %s23, 1
        %s261 = scalar_select %p260, %s23, 1
        %p262 = scmp.lt.s32.totalorder %s254, 17
        %s263 = scalar_select %p262, %s254, 17
        %s264 = smul.addr %s263, 3
        %s265 = smul.addr %s261, 54
        %s266 = sadd.s32 %s264, %s265
        %s267 = smul.addr %s266, 4
        %s268 = scalar_lea.vmem %s0, %s267
        %p269 = pneg %p54
        %p270 = pneg %p51
        %s271 = sadd.s32 %s24, 1
        %s272 = smul.u32 %s271, 4
        %s273 = smul.u32 2, %s272
        %p274 = scmp.lt.s32.totalorder %s23, 1
        %s275 = scalar_select %p274, %s23, 1
        %p276 = scmp.lt.s32.totalorder %s273, 17
        %s277 = scalar_select %p276, %s273, 17
        %s278 = smul.addr %s277, 3
        %s279 = smul.addr %s275, 54
        %s280 = sadd.s32 %s278, %s279
        %s281 = smul.addr %s280, 4
        %s282 = scalar_lea.vmem %s1, %s281
        %p283 = pneg %p86
        %p284 = pneg %p83
        %p285 = pneg %p107
        %p286 = pneg %p104
        %p287 = pneg %p128
        %p288 = pneg %p125
        %p289 = pneg %p149
        %p290 = pneg %p146
        %p291 = pneg %p177
        %p292 = pneg %p174
        %s293 = sand.u32 %s164, 1
        %s294 = scalar_lea.sflag [#allocation5], %s293
        %s295 = sand.u32 %s164, 1
        %s296 = smul.addr %s295, 32
        %s297 = scalar_lea.vmem [#allocation4], %s296
        %s298 = smul.u32 8, %s24
        %s299 = ssub.s32 18, %s298
        %p300 = scmp.lt.s32.totalorder %s299, 8
        %s301 = scalar_select %p300, %s299, 8
        %s302 = smul.u32 64, %s301
        %s303 = smul.u32 %s302, 3
        %p304 = scmp.lt.s32.totalorder %s23, 1
        %s305 = scalar_select %p304, %s23, 1
        %p306 = scmp.lt.s32.totalorder %s298, 17
        %s307 = scalar_select %p306, %s298, 17
        %s308 = smul.addr %s307, 3
        %s309 = smul.addr %s305, 54
        %s310 = sadd.s32 %s308, %s309
        %s311 = smul.addr %s310, 4
        %s312 = scalar_lea.vmem %s0, %s311
        %s313 = smul.u32 8, %s24
        %s314 = ssub.s32 18, %s313
        %p315 = scmp.lt.s32.totalorder %s314, 8
        %s316 = scalar_select %p315, %s314, 8
        %s317 = smul.u32 64, %s316
        %s318 = smul.u32 %s317, 3
        %s319 = sadd.s32 %s24, 1
        %s320 = smul.u32 %s319, 4
        %s321 = smul.u32 2, %s320
        %p322 = scmp.lt.s32.totalorder %s23, 1
        %s323 = scalar_select %p322, %s23, 1
        %p324 = scmp.lt.s32.totalorder %s321, 17
        %s325 = scalar_select %p324, %s321, 17
        %s326 = smul.addr %s325, 3
        %s327 = smul.addr %s323, 54
        %s328 = sadd.s32 %s326, %s327
        %s329 = smul.addr %s328, 4
        %s330 = scalar_lea.vmem %s1, %s329
        %s331 = sadd.s32 %s24, 1
        %s332 = smul.u32 %s331, 4
        %s333 = smul.u32 2, %s332
        %v335 = vld [vmem:[%s312] sm:$0xf]
        %v336 = vld [vmem:[%s312 + $0x4] sm:$0xf]
        %v337 = vld [vmem:[%s312 + $0x8] sm:$0x1]
        %v338 = vld [vmem:[%s312 + $0xc] sm:$0xf]
        %v339 = vld [vmem:[%s312 + $0x10] sm:$0xf]
        %v340 = vld [vmem:[%s312 + $0x14] sm:$0x1]
        %v341 = vld [vmem:[%s312 + $0x18] sm:$0xf]
        %v342 = vld [vmem:[%s312 + $0x1c] sm:$0xf]
        %v343 = vld [vmem:[%s312 + $0x20] sm:$0x1]
        %v344 = vld [vmem:[%s312 + $0x24] sm:$0xf]
        %v345 = vld [vmem:[%s312 + $0x28] sm:$0xf]
        %v346 = vld [vmem:[%s312 + $0x2c] sm:$0x1]
        %v347 = vld [vmem:[%s312 + $0x30] sm:$0xf]
        %v348 = vld [vmem:[%s312 + $0x34] sm:$0xf]
        %v349 = vld [vmem:[%s312 + $0x38] sm:$0x1]
        %v350 = vld [vmem:[%s312 + $0x3c] sm:$0xf]
        %v351 = vld [vmem:[%s312 + $0x40] sm:$0xf]
        %v352 = vld [vmem:[%s312 + $0x44] sm:$0x1]
        %v353 = vld [vmem:[%s312 + $0x48] sm:$0xf]
        %v354 = vld [vmem:[%s312 + $0x4c] sm:$0xf]
        %v355 = vld [vmem:[%s312 + $0x50] sm:$0x1]
        %v356 = vld [vmem:[%s312 + $0x54] sm:$0xf]
        %v357 = vld [vmem:[%s312 + $0x58] sm:$0xf]
        %v358 = vld [vmem:[%s312 + $0x5c] sm:$0x1]
        %vm359 = vcmask 27648
        %360 = vst.msk [vmem:[#allocation2] sm:$0xf] %vm359, %v335
        %361 = vst.msk [vmem:[#allocation2 + $0x4] sm:$0xf] %vm359, %v336
        %vm362 = vcmask 24576
        %363 = vst.msk [vmem:[#allocation2 + $0x8] sm:$0x1] %vm362, %v337
        %364 = vst.msk [vmem:[#allocation2 + $0xc] sm:$0xf] %vm359, %v338
        %365 = vst.msk [vmem:[#allocation2 + $0x10] sm:$0xf] %vm359, %v339
        %366 = vst.msk [vmem:[#allocation2 + $0x14] sm:$0x1] %vm362, %v340
        %367 = vst.msk [vmem:[#allocation2 + $0x18] sm:$0xf] %vm359, %v341
        %368 = vst.msk [vmem:[#allocation2 + $0x1c] sm:$0xf] %vm359, %v342
        %369 = vst.msk [vmem:[#allocation2 + $0x20] sm:$0x1] %vm362, %v343
        %370 = vst.msk [vmem:[#allocation2 + $0x24] sm:$0xf] %vm359, %v344
        %371 = vst.msk [vmem:[#allocation2 + $0x28] sm:$0xf] %vm359, %v345
        %372 = vst.msk [vmem:[#allocation2 + $0x2c] sm:$0x1] %vm362, %v346
        %373 = vst.msk [vmem:[#allocation2 + $0x30] sm:$0xf] %vm359, %v347
        %374 = vst.msk [vmem:[#allocation2 + $0x34] sm:$0xf] %vm359, %v348
        %375 = vst.msk [vmem:[#allocation2 + $0x38] sm:$0x1] %vm362, %v349
        %376 = vst.msk [vmem:[#allocation2 + $0x3c] sm:$0xf] %vm359, %v350
        %377 = vst.msk [vmem:[#allocation2 + $0x40] sm:$0xf] %vm359, %v351
        %378 = vst.msk [vmem:[#allocation2 + $0x44] sm:$0x1] %vm362, %v352
        %379 = vst.msk [vmem:[#allocation2 + $0x48] sm:$0xf] %vm359, %v353
        %380 = vst.msk [vmem:[#allocation2 + $0x4c] sm:$0xf] %vm359, %v354
        %381 = vst.msk [vmem:[#allocation2 + $0x50] sm:$0x1] %vm362, %v355
        %382 = vst.msk [vmem:[#allocation2 + $0x54] sm:$0xf] %vm359, %v356
        %383 = vst.msk [vmem:[#allocation2 + $0x58] sm:$0xf] %vm359, %v357
        %384 = vst.msk [vmem:[#allocation2 + $0x5c] sm:$0x1] %vm362, %v358
        %v385 = vld [vmem:[%s330] sm:$0xf]
        %v386 = vld [vmem:[%s330 + $0x4] sm:$0xf]
        %v387 = vld [vmem:[%s330 + $0x8] sm:$0x1]
        %v388 = vld [vmem:[%s330 + $0xc] sm:$0xf]
        %v389 = vld [vmem:[%s330 + $0x10] sm:$0xf]
        %v390 = vld [vmem:[%s330 + $0x14] sm:$0x1]
        %s391 = scalar_lea.vmem [#allocation2], 96
        %392 = vst.msk [vmem:[%s391] sm:$0xf] %vm359, %v385
        %393 = vst.msk [vmem:[%s391 + $0x4] sm:$0xf] %vm359, %v386
        %394 = vst.msk [vmem:[%s391 + $0x8] sm:$0x1] %vm362, %v387
        %395 = vst.msk [vmem:[%s391 + $0xc] sm:$0xf] %vm359, %v388
        %396 = vst.msk [vmem:[%s391 + $0x10] sm:$0xf] %vm359, %v389
        %397 = vst.msk [vmem:[%s391 + $0x14] sm:$0x1] %vm362, %v390
        %v398 = vld [vmem:[#allocation2] sm:$0xf]
        %v399 = vld [vmem:[#allocation2 + $0x4] sm:$0xf]
        %v400 = vld [vmem:[#allocation2 + $0xc] sm:$0xf]
        %v401 = vld [vmem:[#allocation2 + $0x10] sm:$0xf]
        %v402 = vld [vmem:[#allocation2 + $0x18] sm:$0xf]
        %v403 = vld [vmem:[#allocation2 + $0x1c] sm:$0xf]
        %v404 = vld [vmem:[#allocation2 + $0x24] sm:$0xf]
        %v405 = vld [vmem:[#allocation2 + $0x28] sm:$0xf]
        %v406 = vld [vmem:[#allocation2 + $0x30] sm:$0xf]
        %v407 = vld [vmem:[#allocation2 + $0x34] sm:$0xf]
        %v408 = vld [vmem:[#allocation2 + $0x3c] sm:$0xf]
        %v409 = vld [vmem:[#allocation2 + $0x40] sm:$0xf]
        %v410 = vld [vmem:[#allocation2 + $0x48] sm:$0xf]
        %v411 = vld [vmem:[#allocation2 + $0x4c] sm:$0xf]
        %v412 = vld [vmem:[#allocation2 + $0x54] sm:$0xf]
        %v413 = vld [vmem:[#allocation2 + $0x58] sm:$0xf]
        %v414 = vld [vmem:[%s2] sm:$0x3]
        %v415 = vld [vmem:[#allocation2 + $0x8] sm:$0x1]
        %v416 = vld [vmem:[#allocation2 + $0x14] sm:$0x1]
        %v417 = vld [vmem:[#allocation2 + $0x20] sm:$0x1]
        %v418 = vld [vmem:[#allocation2 + $0x2c] sm:$0x1]
        %v419 = vld [vmem:[#allocation2 + $0x38] sm:$0x1]
        %v420 = vld [vmem:[#allocation2 + $0x44] sm:$0x1]
        %v421 = vld [vmem:[#allocation2 + $0x50] sm:$0x1]
        %v422 = vld [vmem:[#allocation2 + $0x5c] sm:$0x1]
        %vm423 = vsmask.f32 3328
        %vm424 = vsmask.f32 7440
        %vm425 = vmor %vm423, %vm424
        %v427 = vshrl.u32 %v398, 16
        %v429 = vrot.slane %v427, 4
        %v430 = vshll.u32 %v398, 16
        %v432 = vrot.slane %v430, 5
        %v433 = vor.u32 %v429, %v432
        %v434 = vrot.slane %v433, 4
        %v436 = vshll.u32 %v399, 16
        %v438 = vrot.slane %v436, 5
        %v439 = vsel %vm425, %v434, %v438
        %v440 = vshrl.u32 %v399, 16
        %v442 = vrot.slane %v440, 4
        %v443 = vor.u32 %v442, %v438
        %v444 = vrot.slane %v443, 4
        %v446 = vshll.u32 %v415, 16
        %v448 = vrot.slane %v446, 5
        %v449 = vsel %vm425, %v444, %v448
        %v451 = vshrl.u32 %v400, 16
        %v453 = vrot.slane %v451, 4
        %v454 = vshll.u32 %v400, 16
        %v456 = vrot.slane %v454, 5
        %v457 = vor.u32 %v453, %v456
        %v458 = vrot.slane %v457, 4
        %v460 = vshll.u32 %v401, 16
        %v462 = vrot.slane %v460, 5
        %v463 = vsel %vm425, %v458, %v462
        %v464 = vshrl.u32 %v401, 16
        %v466 = vrot.slane %v464, 4
        %v467 = vor.u32 %v466, %v462
        %v468 = vrot.slane %v467, 4
        %v470 = vshll.u32 %v416, 16
        %v472 = vrot.slane %v470, 5
        %v473 = vsel %vm425, %v468, %v472
        %v475 = vshrl.u32 %v402, 16
        %v477 = vrot.slane %v475, 4
        %v478 = vshll.u32 %v402, 16
        %v480 = vrot.slane %v478, 5
        %v481 = vor.u32 %v477, %v480
        %v482 = vrot.slane %v481, 4
        %v484 = vshll.u32 %v403, 16
        %v486 = vrot.slane %v484, 5
        %v487 = vsel %vm425, %v482, %v486
        %v488 = vshrl.u32 %v403, 16
        %v490 = vrot.slane %v488, 4
        %v491 = vor.u32 %v490, %v486
        %v492 = vrot.slane %v491, 4
        %v494 = vshll.u32 %v417, 16
        %v496 = vrot.slane %v494, 5
        %v497 = vsel %vm425, %v492, %v496
        %v499 = vshrl.u32 %v404, 16
        %v501 = vrot.slane %v499, 4
        %v502 = vshll.u32 %v404, 16
        %v504 = vrot.slane %v502, 5
        %v505 = vor.u32 %v501, %v504
        %v506 = vrot.slane %v505, 4
        %v508 = vshll.u32 %v405, 16
        %v510 = vrot.slane %v508, 5
        %v511 = vsel %vm425, %v506, %v510
        %v512 = vshrl.u32 %v405, 16
        %v514 = vrot.slane %v512, 4
        %v515 = vor.u32 %v514, %v510
        %v516 = vrot.slane %v515, 4
        %v518 = vshll.u32 %v418, 16
        %v520 = vrot.slane %v518, 5
        %v521 = vsel %vm425, %v516, %v520
        %v523 = vshrl.u32 %v406, 16
        %v525 = vrot.slane %v523, 4
        %v526 = vshll.u32 %v406, 16
        %v528 = vrot.slane %v526, 5
        %v529 = vor.u32 %v525, %v528
        %v530 = vrot.slane %v529, 4
        %v532 = vshll.u32 %v407, 16
        %v534 = vrot.slane %v532, 5
        %v535 = vsel %vm425, %v530, %v534
        %v536 = vshrl.u32 %v407, 16
        %v538 = vrot.slane %v536, 4
        %v539 = vor.u32 %v538, %v534
        %v540 = vrot.slane %v539, 4
        %v542 = vshll.u32 %v419, 16
        %v544 = vrot.slane %v542, 5
        %v545 = vsel %vm425, %v540, %v544
        %v547 = vshrl.u32 %v408, 16
        %v549 = vrot.slane %v547, 4
        %v550 = vshll.u32 %v408, 16
        %v552 = vrot.slane %v550, 5
        %v553 = vor.u32 %v549, %v552
        %v554 = vrot.slane %v553, 4
        %v556 = vshll.u32 %v409, 16
        %v558 = vrot.slane %v556, 5
        %v559 = vsel %vm425, %v554, %v558
        %v560 = vshrl.u32 %v409, 16
        %v562 = vrot.slane %v560, 4
        %v563 = vor.u32 %v562, %v558
        %v564 = vrot.slane %v563, 4
        %v566 = vshll.u32 %v420, 16
        %v568 = vrot.slane %v566, 5
        %v569 = vsel %vm425, %v564, %v568
        %v571 = vshrl.u32 %v410, 16
        %v573 = vrot.slane %v571, 4
        %v574 = vshll.u32 %v410, 16
        %v576 = vrot.slane %v574, 5
        %v577 = vor.u32 %v573, %v576
        %v578 = vrot.slane %v577, 4
        %v580 = vshll.u32 %v411, 16
        %v582 = vrot.slane %v580, 5
        %v583 = vsel %vm425, %v578, %v582
        %v584 = vshrl.u32 %v411, 16
        %v586 = vrot.slane %v584, 4
        %v587 = vor.u32 %v586, %v582
        %v588 = vrot.slane %v587, 4
        %v590 = vshll.u32 %v421, 16
        %v592 = vrot.slane %v590, 5
        %v593 = vsel %vm425, %v588, %v592
        %v595 = vshrl.u32 %v412, 16
        %v597 = vrot.slane %v595, 4
        %v598 = vshll.u32 %v412, 16
        %v600 = vrot.slane %v598, 5
        %v601 = vor.u32 %v597, %v600
        %v602 = vrot.slane %v601, 4
        %v604 = vshll.u32 %v413, 16
        %v606 = vrot.slane %v604, 5
        %v607 = vsel %vm425, %v602, %v606
        %v608 = vshrl.u32 %v413, 16
        %v610 = vrot.slane %v608, 4
        %v611 = vor.u32 %v610, %v606
        %v612 = vrot.slane %v611, 4
        %v614 = vshll.u32 %v422, 16
        %v616 = vrot.slane %v614, 5
        %v617 = vsel %vm425, %v612, %v616
        %s618 = scalar_lea.vmem %s2, 2
        %v619 = vld [vmem:[%s618] sm:$0x3]
        %v620 = vunpack.c.l.b16 %v439
        %v621 = vunpack.c.l.b16 %v449
        %v622 = vunpack.c.l.b16 %v463
        %v623 = vunpack.c.l.b16 %v473
        %v624 = vunpack.c.l.b16 %v487
        %v625 = vunpack.c.l.b16 %v497
        %v626 = vunpack.c.l.b16 %v511
        %v627 = vunpack.c.l.b16 %v521
        %v628 = vunpack.c.l.b16 %v535
        %v629 = vunpack.c.l.b16 %v545
        %v630 = vunpack.c.l.b16 %v559
        %v631 = vunpack.c.l.b16 %v569
        %v632 = vunpack.c.l.b16 %v583
        %v633 = vunpack.c.l.b16 %v593
        %v634 = vunpack.c.l.b16 %v607
        %v635 = vunpack.c.l.b16 %v617
        %v636 = vpack.c.b16 %v621, %v620
        %v637 = vpack.c.b16 %v623, %v622
        %v638 = vpack.c.b16 %v625, %v624
        %v639 = vpack.c.b16 %v627, %v626
        %v640 = vpack.c.b16 %v629, %v628
        %v641 = vpack.c.b16 %v631, %v630
        %v642 = vpack.c.b16 %v633, %v632
        %v643 = vpack.c.b16 %v635, %v634
        %vm644 = vcmask 31744
        %v646 = vsel %vm644, %v636, 0
        %v649 = vsel %vm644, %v637, 0
        %v652 = vsel %vm644, %v638, 0
        %v655 = vsel %vm644, %v639, 0
        %v658 = vsel %vm644, %v640, 0
        %v661 = vsel %vm644, %v641, 0
        %v664 = vsel %vm644, %v642, 0
        %v667 = vsel %vm644, %v643, 0
        %vm669 = vcmask 1041408
        %v671 = vsel %vm669, %v619, 0
        %673 = vmatprep.subr.bf16.mxu0 0
        %674 = vmatpush1.bf16.msra.mxu0 %v671
        %675 = vmatprep.subr.bf16.mxu0 0
        %676 = vmatpush1.bf16.msra.mxu0 0
        %677 = vmatprep.subr.bf16.mxu0 0
        %678 = vmatpush1.bf16.msra.mxu0 0
        %679 = vmatprep.subr.bf16.mxu0 0
        %680 = vmatpush1.bf16.msra.mxu0 0
        %681 = vmatprep.subr.bf16.mxu0 0
        %682 = vmatpush1.bf16.msra.mxu0 0
        %683 = vmatprep.subr.bf16.mxu0 0
        %684 = vmatpush1.bf16.msra.mxu0 0
        %685 = vmatprep.subr.bf16.mxu0 0
        %686 = vmatpush1.bf16.msra.mxu0 0
        %687 = vmatprep.subr.bf16.mxu0 0
        %688 = vmatpush1.bf16.msra.mxu0 0
        %689 = vmatprep.subr.bf16.mxu0 0
        %690 = vmatpush1.bf16.msra.mxu0 0
        %691 = vmatprep.subr.bf16.mxu0 0
        %692 = vmatpush1.bf16.msra.mxu0 0
        %693 = vmatprep.subr.bf16.mxu0 0
        %694 = vmatpush1.bf16.msra.mxu0 0
        %695 = vmatprep.subr.bf16.mxu0 0
        %696 = vmatpush1.bf16.msra.mxu0 0
        %697 = vmatprep.subr.bf16.mxu0 0
        %698 = vmatpush1.bf16.msra.mxu0 0
        %699 = vmatprep.subr.bf16.mxu0 0
        %700 = vmatpush1.bf16.msra.mxu0 0
        %701 = vmatprep.subr.bf16.mxu0 0
        %702 = vmatpush1.bf16.msra.mxu0 0
        %703 = vmatprep.subr.bf16.mxu0 0
        %704 = vmatpush1.bf16.msra.mxu0 0
        %705 = vmatprep.mubr.bf16.mxu0 0
        %706 = vmatmul.mubr.bf16.gmra.mrb[0].mxu0 %v646
        %v707 = vpop.f32.mrb[0].mxu0
        %v708 = vadd.f32 0.0, %v707
        %v709 = vpop.f32.mrb[0].mxu0
        %v710 = vpop.f32.mrb[0].mxu0
        %v711 = vadd.f32 0.0, %v710
        %v712 = vpop.f32.mrb[0].mxu0
        %713 = vmatprep.mubr.bf16.mxu0 0
        %714 = vmatmul.mubr.bf16.gmra.mrb[0].mxu0 %v649
        %v715 = vpop.f32.mrb[0].mxu0
        %v716 = vadd.f32 0.0, %v715
        %v717 = vpop.f32.mrb[0].mxu0
        %v718 = vpop.f32.mrb[0].mxu0
        %v719 = vadd.f32 0.0, %v718
        %v720 = vpop.f32.mrb[0].mxu0
        %721 = vmatprep.mubr.bf16.mxu0 0
        %722 = vmatmul.mubr.bf16.gmra.mrb[0].mxu0 %v652
        %v723 = vpop.f32.mrb[0].mxu0
        %v724 = vadd.f32 0.0, %v723
        %v725 = vpop.f32.mrb[0].mxu0
        %v726 = vpop.f32.mrb[0].mxu0
        %v727 = vadd.f32 0.0, %v726
        %v728 = vpop.f32.mrb[0].mxu0
        %729 = vmatprep.mubr.bf16.mxu0 0
        %730 = vmatmul.mubr.bf16.gmra.mrb[0].mxu0 %v655
        %v731 = vpop.f32.mrb[0].mxu0
        %v732 = vadd.f32 0.0, %v731
        %v733 = vpop.f32.mrb[0].mxu0
        %v734 = vpop.f32.mrb[0].mxu0
        %v735 = vadd.f32 0.0, %v734
        %v736 = vpop.f32.mrb[0].mxu0
        %737 = vmatprep.mubr.bf16.mxu0 0
        %738 = vmatmul.mubr.bf16.gmra.mrb[0].mxu0 %v658
        %v739 = vpop.f32.mrb[0].mxu0
        %v740 = vadd.f32 0.0, %v739
        %v741 = vpop.f32.mrb[0].mxu0
        %v742 = vpop.f32.mrb[0].mxu0
        %v743 = vadd.f32 0.0, %v742
        %v744 = vpop.f32.mrb[0].mxu0
        %745 = vmatprep.mubr.bf16.mxu0 0
        %746 = vmatmul.mubr.bf16.gmra.mrb[0].mxu0 %v661
        %v747 = vpop.f32.mrb[0].mxu0
        %v748 = vadd.f32 0.0, %v747
        %v749 = vpop.f32.mrb[0].mxu0
        %v750 = vpop.f32.mrb[0].mxu0
        %v751 = vadd.f32 0.0, %v750
        %v752 = vpop.f32.mrb[0].mxu0
        %753 = vmatprep.mubr.bf16.mxu0 0
        %754 = vmatmul.mubr.bf16.gmra.mrb[0].mxu0 %v664
        %v755 = vpop.f32.mrb[0].mxu0
        %v756 = vadd.f32 0.0, %v755
        %v757 = vpop.f32.mrb[0].mxu0
        %v758 = vpop.f32.mrb[0].mxu0
        %v759 = vadd.f32 0.0, %v758
        %v760 = vpop.f32.mrb[0].mxu0
        %761 = vmatprep.mubr.bf16.mxu0 0
        %762 = vmatmul.mubr.bf16.gmra.mrb[0].mxu0 %v667
        %v763 = vpop.f32.mrb[0].mxu0
        %v764 = vadd.f32 0.0, %v763
        %v765 = vpop.f32.mrb[0].mxu0
        %v766 = vpop.f32.mrb[0].mxu0
        %v767 = vadd.f32 0.0, %v766
        %v768 = vpop.f32.mrb[0].mxu0
        %769 = vdwg.mxu0
        %v786 = vunpack.c.l.b16 %v398
        %v787 = vunpack.c.l.b16 %v399
        %v788 = vunpack.c.l.b16 %v400
        %v789 = vunpack.c.l.b16 %v401
        %v790 = vunpack.c.l.b16 %v402
        %v791 = vunpack.c.l.b16 %v403
        %v792 = vunpack.c.l.b16 %v404
        %v793 = vunpack.c.l.b16 %v405
        %v794 = vunpack.c.l.b16 %v406
        %v795 = vunpack.c.l.b16 %v407
        %v796 = vunpack.c.l.b16 %v408
        %v797 = vunpack.c.l.b16 %v409
        %v798 = vunpack.c.l.b16 %v410
        %v799 = vunpack.c.l.b16 %v411
        %v800 = vunpack.c.l.b16 %v412
        %v801 = vunpack.c.l.b16 %v413
        %v802 = vpack.c.b16 %v787, %v786
        %v803 = vpack.c.b16 %v789, %v788
        %v804 = vpack.c.b16 %v791, %v790
        %v805 = vpack.c.b16 %v793, %v792
        %v806 = vpack.c.b16 %v795, %v794
        %v807 = vpack.c.b16 %v797, %v796
        %v808 = vpack.c.b16 %v799, %v798
        %v809 = vpack.c.b16 %v801, %v800
        %v811 = vsel %vm644, %v802, 0
        %v814 = vsel %vm644, %v803, 0
        %v817 = vsel %vm644, %v804, 0
        %v820 = vsel %vm644, %v805, 0
        %v823 = vsel %vm644, %v806, 0
        %v826 = vsel %vm644, %v807, 0
        %v829 = vsel %vm644, %v808, 0
        %v832 = vsel %vm644, %v809, 0
        %v835 = vsel %vm669, %v414, 0
        %837 = vmatprep.subr.bf16.mxu0 0
        %838 = vmatpush1.bf16.msra.mxu0 %v835
        %839 = vmatprep.subr.bf16.mxu0 0
        %840 = vmatpush1.bf16.msra.mxu0 0
        %841 = vmatprep.subr.bf16.mxu0 0
        %842 = vmatpush1.bf16.msra.mxu0 0
        %843 = vmatprep.subr.bf16.mxu0 0
        %844 = vmatpush1.bf16.msra.mxu0 0
        %845 = vmatprep.subr.bf16.mxu0 0
        %846 = vmatpush1.bf16.msra.mxu0 0
        %847 = vmatprep.subr.bf16.mxu0 0
        %848 = vmatpush1.bf16.msra.mxu0 0
        %849 = vmatprep.subr.bf16.mxu0 0
        %850 = vmatpush1.bf16.msra.mxu0 0
        %851 = vmatprep.subr.bf16.mxu0 0
        %852 = vmatpush1.bf16.msra.mxu0 0
        %853 = vmatprep.subr.bf16.mxu0 0
        %854 = vmatpush1.bf16.msra.mxu0 0
        %855 = vmatprep.subr.bf16.mxu0 0
        %856 = vmatpush1.bf16.msra.mxu0 0
        %857 = vmatprep.subr.bf16.mxu0 0
        %858 = vmatpush1.bf16.msra.mxu0 0
        %859 = vmatprep.subr.bf16.mxu0 0
        %860 = vmatpush1.bf16.msra.mxu0 0
        %861 = vmatprep.subr.bf16.mxu0 0
        %862 = vmatpush1.bf16.msra.mxu0 0
        %863 = vmatprep.subr.bf16.mxu0 0
        %864 = vmatpush1.bf16.msra.mxu0 0
        %865 = vmatprep.subr.bf16.mxu0 0
        %866 = vmatpush1.bf16.msra.mxu0 0
        %867 = vmatprep.subr.bf16.mxu0 0
        %868 = vmatpush1.bf16.msra.mxu0 0
        %869 = vmatprep.mubr.bf16.mxu0 0
        %870 = vmatmul.mubr.bf16.gmra.mrb[0].mxu0 %v811
        %v871 = vpop.f32.mrb[0].mxu0
        %v872 = vadd.f32 %v708, %v871
        %v873 = vpop.f32.mrb[0].mxu0
        %v874 = vpop.f32.mrb[0].mxu0
        %v875 = vadd.f32 %v711, %v874
        %v876 = vpop.f32.mrb[0].mxu0
        %877 = vmatprep.mubr.bf16.mxu0 0
        %878 = vmatmul.mubr.bf16.gmra.mrb[0].mxu0 %v814
        %v879 = vpop.f32.mrb[0].mxu0
        %v880 = vadd.f32 %v716, %v879
        %v881 = vpop.f32.mrb[0].mxu0
        %v882 = vpop.f32.mrb[0].mxu0
        %v883 = vadd.f32 %v719, %v882
        %v884 = vpop.f32.mrb[0].mxu0
        %885 = vmatprep.mubr.bf16.mxu0 0
        %886 = vmatmul.mubr.bf16.gmra.mrb[0].mxu0 %v817
        %v887 = vpop.f32.mrb[0].mxu0
        %v888 = vadd.f32 %v724, %v887
        %v889 = vpop.f32.mrb[0].mxu0
        %v890 = vpop.f32.mrb[0].mxu0
        %v891 = vadd.f32 %v727, %v890
        %v892 = vpop.f32.mrb[0].mxu0
        %893 = vmatprep.mubr.bf16.mxu0 0
        %894 = vmatmul.mubr.bf16.gmra.mrb[0].mxu0 %v820
        %v895 = vpop.f32.mrb[0].mxu0
        %v896 = vadd.f32 %v732, %v895
        %v897 = vpop.f32.mrb[0].mxu0
        %v898 = vpop.f32.mrb[0].mxu0
        %v899 = vadd.f32 %v735, %v898
        %v900 = vpop.f32.mrb[0].mxu0
        %901 = vmatprep.mubr.bf16.mxu0 0
        %902 = vmatmul.mubr.bf16.gmra.mrb[0].mxu0 %v823
        %v903 = vpop.f32.mrb[0].mxu0
        %v904 = vadd.f32 %v740, %v903
        %v905 = vpop.f32.mrb[0].mxu0
        %v906 = vpop.f32.mrb[0].mxu0
        %v907 = vadd.f32 %v743, %v906
        %v908 = vpop.f32.mrb[0].mxu0
        %909 = vmatprep.mubr.bf16.mxu0 0
        %910 = vmatmul.mubr.bf16.gmra.mrb[0].mxu0 %v826
        %v911 = vpop.f32.mrb[0].mxu0
        %v912 = vadd.f32 %v748, %v911
        %v913 = vpop.f32.mrb[0].mxu0
        %v914 = vpop.f32.mrb[0].mxu0
        %v915 = vadd.f32 %v751, %v914
        %v916 = vpop.f32.mrb[0].mxu0
        %917 = vmatprep.mubr.bf16.mxu0 0
        %918 = vmatmul.mubr.bf16.gmra.mrb[0].mxu0 %v829
        %v919 = vpop.f32.mrb[0].mxu0
        %v920 = vadd.f32 %v756, %v919
        %v921 = vpop.f32.mrb[0].mxu0
        %v922 = vpop.f32.mrb[0].mxu0
        %v923 = vadd.f32 %v759, %v922
        %v924 = vpop.f32.mrb[0].mxu0
        %925 = vmatprep.mubr.bf16.mxu0 0
        %926 = vmatmul.mubr.bf16.gmra.mrb[0].mxu0 %v832
        %v927 = vpop.f32.mrb[0].mxu0
        %v928 = vadd.f32 %v764, %v927
        %v929 = vpop.f32.mrb[0].mxu0
        %v930 = vpop.f32.mrb[0].mxu0
        %v931 = vadd.f32 %v767, %v930
        %v932 = vpop.f32.mrb[0].mxu0
        %933 = vdwg.mxu0
        %v934 = vld [vmem:[#allocation2] sm:$0xe]
        %v935 = vld [vmem:[#allocation2 + $0xc] sm:$0xe]
        %v936 = vld [vmem:[#allocation2 + $0x18] sm:$0xe]
        %v937 = vld [vmem:[#allocation2 + $0x24] sm:$0xe]
        %v938 = vld [vmem:[#allocation2 + $0x30] sm:$0xe]
        %v939 = vld [vmem:[#allocation2 + $0x3c] sm:$0xe]
        %v940 = vld [vmem:[#allocation2 + $0x48] sm:$0xe]
        %v941 = vld [vmem:[#allocation2 + $0x54] sm:$0xe]
        %vm958 = vcmask 1042432
        %vm959 = vcmask 1046532
        %vm960 = vmor %vm958, %vm959
        %v961 = vrot.slane %v934, 5
        %v962 = vrot.slane %v961, 4
        %v963 = vrot.slane %v399, 5
        %v964 = vsel %vm960, %v962, %v963
        %v965 = vrot.slane %v963, 4
        %v966 = vrot.slane %v415, 5
        %v967 = vsel %vm960, %v965, %v966
        %v968 = vrot.slane %v935, 5
        %v969 = vrot.slane %v968, 4
        %v970 = vrot.slane %v401, 5
        %v971 = vsel %vm960, %v969, %v970
        %v972 = vrot.slane %v970, 4
        %v973 = vrot.slane %v416, 5
        %v974 = vsel %vm960, %v972, %v973
        %v975 = vrot.slane %v936, 5
        %v976 = vrot.slane %v975, 4
        %v977 = vrot.slane %v403, 5
        %v978 = vsel %vm960, %v976, %v977
        %v979 = vrot.slane %v977, 4
        %v980 = vrot.slane %v417, 5
        %v981 = vsel %vm960, %v979, %v980
        %v982 = vrot.slane %v937, 5
        %v983 = vrot.slane %v982, 4
        %v984 = vrot.slane %v405, 5
        %v985 = vsel %vm960, %v983, %v984
        %v986 = vrot.slane %v984, 4
        %v987 = vrot.slane %v418, 5
        %v988 = vsel %vm960, %v986, %v987
        %v989 = vrot.slane %v938, 5
        %v990 = vrot.slane %v989, 4
        %v991 = vrot.slane %v407, 5
        %v992 = vsel %vm960, %v990, %v991
        %v993 = vrot.slane %v991, 4
        %v994 = vrot.slane %v419, 5
        %v995 = vsel %vm960, %v993, %v994
        %v996 = vrot.slane %v939, 5
        %v997 = vrot.slane %v996, 4
        %v998 = vrot.slane %v409, 5
        %v999 = vsel %vm960, %v997, %v998
        %v1000 = vrot.slane %v998, 4
        %v1001 = vrot.slane %v420, 5
        %v1002 = vsel %vm960, %v1000, %v1001
        %v1003 = vrot.slane %v940, 5
        %v1004 = vrot.slane %v1003, 4
        %v1005 = vrot.slane %v411, 5
        %v1006 = vsel %vm960, %v1004, %v1005
        %v1007 = vrot.slane %v1005, 4
        %v1008 = vrot.slane %v421, 5
        %v1009 = vsel %vm960, %v1007, %v1008
        %v1010 = vrot.slane %v941, 5
        %v1011 = vrot.slane %v1010, 4
        %v1012 = vrot.slane %v413, 5
        %v1013 = vsel %vm960, %v1011, %v1012
        %v1014 = vrot.slane %v1012, 4
        %v1015 = vrot.slane %v422, 5
        %v1016 = vsel %vm960, %v1014, %v1015
        %s1017 = scalar_lea.vmem %s2, 4
        %v1018 = vld [vmem:[%s1017] sm:$0x3]
        %v1019 = vunpack.c.l.b16 %v964
        %v1020 = vunpack.c.l.b16 %v967
        %v1021 = vunpack.c.l.b16 %v971
        %v1022 = vunpack.c.l.b16 %v974
        %v1023 = vunpack.c.l.b16 %v978
        %v1024 = vunpack.c.l.b16 %v981
        %v1025 = vunpack.c.l.b16 %v985
        %v1026 = vunpack.c.l.b16 %v988
        %v1027 = vunpack.c.l.b16 %v992
        %v1028 = vunpack.c.l.b16 %v995
        %v1029 = vunpack.c.l.b16 %v999
        %v1030 = vunpack.c.l.b16 %v1002
        %v1031 = vunpack.c.l.b16 %v1006
        %v1032 = vunpack.c.l.b16 %v1009
        %v1033 = vunpack.c.l.b16 %v1013
        %v1034 = vunpack.c.l.b16 %v1016
        %v1035 = vpack.c.b16 %v1020, %v1019
        %v1036 = vpack.c.b16 %v1022, %v1021
        %v1037 = vpack.c.b16 %v1024, %v1023
        %v1038 = vpack.c.b16 %v1026, %v1025
        %v1039 = vpack.c.b16 %v1028, %v1027
        %v1040 = vpack.c.b16 %v1030, %v1029
        %v1041 = vpack.c.b16 %v1032, %v1031
        %v1042 = vpack.c.b16 %v1034, %v1033
        %v1044 = vsel %vm644, %v1035, 0
        %v1047 = vsel %vm644, %v1036, 0
        %v1050 = vsel %vm644, %v1037, 0
        %v1053 = vsel %vm644, %v1038, 0
        %v1056 = vsel %vm644, %v1039, 0
        %v1059 = vsel %vm644, %v1040, 0
        %v1062 = vsel %vm644, %v1041, 0
        %v1065 = vsel %vm644, %v1042, 0
        %v1068 = vsel %vm669, %v1018, 0
        %1070 = vmatprep.subr.bf16.mxu0 0
        %1071 = vmatpush1.bf16.msra.mxu0 %v1068
        %1072 = vmatprep.subr.bf16.mxu0 0
        %1073 = vmatpush1.bf16.msra.mxu0 0
        %1074 = vmatprep.subr.bf16.mxu0 0
        %1075 = vmatpush1.bf16.msra.mxu0 0
        %1076 = vmatprep.subr.bf16.mxu0 0
        %1077 = vmatpush1.bf16.msra.mxu0 0
        %1078 = vmatprep.subr.bf16.mxu0 0
        %1079 = vmatpush1.bf16.msra.mxu0 0
        %1080 = vmatprep.subr.bf16.mxu0 0
        %1081 = vmatpush1.bf16.msra.mxu0 0
        %1082 = vmatprep.subr.bf16.mxu0 0
        %1083 = vmatpush1.bf16.msra.mxu0 0
        %1084 = vmatprep.subr.bf16.mxu0 0
        %1085 = vmatpush1.bf16.msra.mxu0 0
        %1086 = vmatprep.subr.bf16.mxu0 0
        %1087 = vmatpush1.bf16.msra.mxu0 0
        %1088 = vmatprep.subr.bf16.mxu0 0
        %1089 = vmatpush1.bf16.msra.mxu0 0
        %1090 = vmatprep.subr.bf16.mxu0 0
        %1091 = vmatpush1.bf16.msra.mxu0 0
        %1092 = vmatprep.subr.bf16.mxu0 0
        %1093 = vmatpush1.bf16.msra.mxu0 0
        %1094 = vmatprep.subr.bf16.mxu0 0
        %1095 = vmatpush1.bf16.msra.mxu0 0
        %1096 = vmatprep.subr.bf16.mxu0 0
        %1097 = vmatpush1.bf16.msra.mxu0 0
        %1098 = vmatprep.subr.bf16.mxu0 0
        %1099 = vmatpush1.bf16.msra.mxu0 0
        %1100 = vmatprep.subr.bf16.mxu0 0
        %1101 = vmatpush1.bf16.msra.mxu0 0
        %1102 = vmatprep.mubr.bf16.mxu0 0
        %1103 = vmatmul.mubr.bf16.gmra.mrb[0].mxu0 %v1044
        %v1104 = vpop.f32.mrb[0].mxu0
        %v1105 = vadd.f32 0.0, %v1104
        %v1106 = vpop.f32.mrb[0].mxu0
        %v1107 = vpop.f32.mrb[0].mxu0
        %v1108 = vadd.f32 0.0, %v1107
        %v1109 = vpop.f32.mrb[0].mxu0
        %1110 = vmatprep.mubr.bf16.mxu0 0
        %1111 = vmatmul.mubr.bf16.gmra.mrb[0].mxu0 %v1047
        %v1112 = vpop.f32.mrb[0].mxu0
        %v1113 = vadd.f32 0.0, %v1112
        %v1114 = vpop.f32.mrb[0].mxu0
        %v1115 = vpop.f32.mrb[0].mxu0
        %v1116 = vadd.f32 0.0, %v1115
        %v1117 = vpop.f32.mrb[0].mxu0
        %1118 = vmatprep.mubr.bf16.mxu0 0
        %1119 = vmatmul.mubr.bf16.gmra.mrb[0].mxu0 %v1050
        %v1120 = vpop.f32.mrb[0].mxu0
        %v1121 = vadd.f32 0.0, %v1120
        %v1122 = vpop.f32.mrb[0].mxu0
        %v1123 = vpop.f32.mrb[0].mxu0
        %v1124 = vadd.f32 0.0, %v1123
        %v1125 = vpop.f32.mrb[0].mxu0
        %1126 = vmatprep.mubr.bf16.mxu0 0
        %1127 = vmatmul.mubr.bf16.gmra.mrb[0].mxu0 %v1053
        %v1128 = vpop.f32.mrb[0].mxu0
        %v1129 = vadd.f32 0.0, %v1128
        %v1130 = vpop.f32.mrb[0].mxu0
        %v1131 = vpop.f32.mrb[0].mxu0
        %v1132 = vadd.f32 0.0, %v1131
        %v1133 = vpop.f32.mrb[0].mxu0
        %1134 = vmatprep.mubr.bf16.mxu0 0
        %1135 = vmatmul.mubr.bf16.gmra.mrb[0].mxu0 %v1056
        %v1136 = vpop.f32.mrb[0].mxu0
        %v1137 = vadd.f32 0.0, %v1136
        %v1138 = vpop.f32.mrb[0].mxu0
        %v1139 = vpop.f32.mrb[0].mxu0
        %v1140 = vadd.f32 0.0, %v1139
        %v1141 = vpop.f32.mrb[0].mxu0
        %1142 = vmatprep.mubr.bf16.mxu0 0
        %1143 = vmatmul.mubr.bf16.gmra.mrb[0].mxu0 %v1059
        %v1144 = vpop.f32.mrb[0].mxu0
        %v1145 = vadd.f32 0.0, %v1144
        %v1146 = vpop.f32.mrb[0].mxu0
        %v1147 = vpop.f32.mrb[0].mxu0
        %v1148 = vadd.f32 0.0, %v1147
        %v1149 = vpop.f32.mrb[0].mxu0
        %1150 = vmatprep.mubr.bf16.mxu0 0
        %1151 = vmatmul.mubr.bf16.gmra.mrb[0].mxu0 %v1062
        %v1152 = vpop.f32.mrb[0].mxu0
        %v1153 = vadd.f32 0.0, %v1152
        %v1154 = vpop.f32.mrb[0].mxu0
        %v1155 = vpop.f32.mrb[0].mxu0
        %v1156 = vadd.f32 0.0, %v1155
        %v1157 = vpop.f32.mrb[0].mxu0
        %1158 = vmatprep.mubr.bf16.mxu0 0
        %1159 = vmatmul.mubr.bf16.gmra.mrb[0].mxu0 %v1065
        %v1160 = vpop.f32.mrb[0].mxu0
        %v1161 = vadd.f32 0.0, %v1160
        %v1162 = vpop.f32.mrb[0].mxu0
        %v1163 = vpop.f32.mrb[0].mxu0
        %v1164 = vadd.f32 0.0, %v1163
        %v1165 = vpop.f32.mrb[0].mxu0
        %1166 = vdwg.mxu0
        %v1167 = vadd.f32 %v872, %v1105
        %v1168 = vadd.f32 %v875, %v1108
        %v1169 = vadd.f32 %v880, %v1113
        %v1170 = vadd.f32 %v883, %v1116
        %v1171 = vadd.f32 %v888, %v1121
        %v1172 = vadd.f32 %v891, %v1124
        %v1173 = vadd.f32 %v896, %v1129
        %v1174 = vadd.f32 %v899, %v1132
        %v1175 = vadd.f32 %v904, %v1137
        %v1176 = vadd.f32 %v907, %v1140
        %v1177 = vadd.f32 %v912, %v1145
        %v1178 = vadd.f32 %v915, %v1148
        %v1179 = vadd.f32 %v920, %v1153
        %v1180 = vadd.f32 %v923, %v1156
        %v1181 = vadd.f32 %v928, %v1161
        %v1182 = vadd.f32 %v931, %v1164
        %s1183 = scalar_lea.vmem [#allocation2], 12
        %v1184 = vld [vmem:[%s1183] sm:$0xf]
        %v1185 = vld [vmem:[%s1183 + $0x4] sm:$0xf]
        %v1186 = vld [vmem:[%s1183 + $0xc] sm:$0xf]
        %v1187 = vld [vmem:[%s1183 + $0x10] sm:$0xf]
        %v1188 = vld [vmem:[%s1183 + $0x18] sm:$0xf]
        %v1189 = vld [vmem:[%s1183 + $0x1c] sm:$0xf]
        %v1190 = vld [vmem:[%s1183 + $0x24] sm:$0xf]
        %v1191 = vld [vmem:[%s1183 + $0x28] sm:$0xf]
        %v1192 = vld [vmem:[%s1183 + $0x30] sm:$0xf]
        %v1193 = vld [vmem:[%s1183 + $0x34] sm:$0xf]
        %v1194 = vld [vmem:[%s1183 + $0x3c] sm:$0xf]
        %v1195 = vld [vmem:[%s1183 + $0x40] sm:$0xf]
        %v1196 = vld [vmem:[%s1183 + $0x48] sm:$0xf]
        %v1197 = vld [vmem:[%s1183 + $0x4c] sm:$0xf]
        %v1198 = vld [vmem:[%s1183 + $0x54] sm:$0xf]
        %v1199 = vld [vmem:[%s1183 + $0x58] sm:$0xf]
        %s1200 = scalar_lea.vmem %s2, 6
        %v1201 = vld [vmem:[%s1200] sm:$0x3]
        %v1218 = vunpack.c.l.b16 %v1184
        %v1219 = vunpack.c.l.b16 %v1185
        %v1220 = vunpack.c.l.b16 %v1186
        %v1221 = vunpack.c.l.b16 %v1187
        %v1222 = vunpack.c.l.b16 %v1188
        %v1223 = vunpack.c.l.b16 %v1189
        %v1224 = vunpack.c.l.b16 %v1190
        %v1225 = vunpack.c.l.b16 %v1191
        %v1226 = vunpack.c.l.b16 %v1192
        %v1227 = vunpack.c.l.b16 %v1193
        %v1228 = vunpack.c.l.b16 %v1194
        %v1229 = vunpack.c.l.b16 %v1195
        %v1230 = vunpack.c.l.b16 %v1196
        %v1231 = vunpack.c.l.b16 %v1197
        %v1232 = vunpack.c.l.b16 %v1198
        %v1233 = vunpack.c.l.b16 %v1199
        %v1234 = vpack.c.b16 %v1219, %v1218
        %v1235 = vpack.c.b16 %v1221, %v1220
        %v1236 = vpack.c.b16 %v1223, %v1222
        %v1237 = vpack.c.b16 %v1225, %v1224
        %v1238 = vpack.c.b16 %v1227, %v1226
        %v1239 = vpack.c.b16 %v1229, %v1228
        %v1240 = vpack.c.b16 %v1231, %v1230
        %v1241 = vpack.c.b16 %v1233, %v1232
        %v1243 = vsel %vm644, %v1234, 0
        %v1246 = vsel %vm644, %v1235, 0
        %v1249 = vsel %vm644, %v1236, 0
        %v1252 = vsel %vm644, %v1237, 0
        %v1255 = vsel %vm644, %v1238, 0
        %v1258 = vsel %vm644, %v1239, 0
        %v1261 = vsel %vm644, %v1240, 0
        %v1264 = vsel %vm644, %v1241, 0
        %v1267 = vsel %vm669, %v1201, 0
        %1269 = vmatprep.subr.bf16.mxu0 0
        %1270 = vmatpush1.bf16.msra.mxu0 %v1267
        %1271 = vmatprep.subr.bf16.mxu0 0
        %1272 = vmatpush1.bf16.msra.mxu0 0
        %1273 = vmatprep.subr.bf16.mxu0 0
        %1274 = vmatpush1.bf16.msra.mxu0 0
        %1275 = vmatprep.subr.bf16.mxu0 0
        %1276 = vmatpush1.bf16.msra.mxu0 0
        %1277 = vmatprep.subr.bf16.mxu0 0
        %1278 = vmatpush1.bf16.msra.mxu0 0
        %1279 = vmatprep.subr.bf16.mxu0 0
        %1280 = vmatpush1.bf16.msra.mxu0 0
        %1281 = vmatprep.subr.bf16.mxu0 0
        %1282 = vmatpush1.bf16.msra.mxu0 0
        %1283 = vmatprep.subr.bf16.mxu0 0
        %1284 = vmatpush1.bf16.msra.mxu0 0
        %1285 = vmatprep.subr.bf16.mxu0 0
        %1286 = vmatpush1.bf16.msra.mxu0 0
        %1287 = vmatprep.subr.bf16.mxu0 0
        %1288 = vmatpush1.bf16.msra.mxu0 0
        %1289 = vmatprep.subr.bf16.mxu0 0
        %1290 = vmatpush1.bf16.msra.mxu0 0
        %1291 = vmatprep.subr.bf16.mxu0 0
        %1292 = vmatpush1.bf16.msra.mxu0 0
        %1293 = vmatprep.subr.bf16.mxu0 0
        %1294 = vmatpush1.bf16.msra.mxu0 0
        %1295 = vmatprep.subr.bf16.mxu0 0
        %1296 = vmatpush1.bf16.msra.mxu0 0
        %1297 = vmatprep.subr.bf16.mxu0 0
        %1298 = vmatpush1.bf16.msra.mxu0 0
        %1299 = vmatprep.subr.bf16.mxu0 0
        %1300 = vmatpush1.bf16.msra.mxu0 0
        %1301 = vmatprep.mubr.bf16.mxu0 0
        %1302 = vmatmul.mubr.bf16.gmra.mrb[0].mxu0 %v1243
        %v1303 = vpop.f32.mrb[0].mxu0
        %v1304 = vadd.f32 0.0, %v1303
        %v1305 = vpop.f32.mrb[0].mxu0
        %v1306 = vpop.f32.mrb[0].mxu0
        %v1307 = vadd.f32 0.0, %v1306
        %v1308 = vpop.f32.mrb[0].mxu0
        %1309 = vmatprep.mubr.bf16.mxu0 0
        %1310 = vmatmul.mubr.bf16.gmra.mrb[0].mxu0 %v1246
        %v1311 = vpop.f32.mrb[0].mxu0
        %v1312 = vadd.f32 0.0, %v1311
        %v1313 = vpop.f32.mrb[0].mxu0
        %v1314 = vpop.f32.mrb[0].mxu0
        %v1315 = vadd.f32 0.0, %v1314
        %v1316 = vpop.f32.mrb[0].mxu0
        %1317 = vmatprep.mubr.bf16.mxu0 0
        %1318 = vmatmul.mubr.bf16.gmra.mrb[0].mxu0 %v1249
        %v1319 = vpop.f32.mrb[0].mxu0
        %v1320 = vadd.f32 0.0, %v1319
        %v1321 = vpop.f32.mrb[0].mxu0
        %v1322 = vpop.f32.mrb[0].mxu0
        %v1323 = vadd.f32 0.0, %v1322
        %v1324 = vpop.f32.mrb[0].mxu0
        %1325 = vmatprep.mubr.bf16.mxu0 0
        %1326 = vmatmul.mubr.bf16.gmra.mrb[0].mxu0 %v1252
        %v1327 = vpop.f32.mrb[0].mxu0
        %v1328 = vadd.f32 0.0, %v1327
        %v1329 = vpop.f32.mrb[0].mxu0
        %v1330 = vpop.f32.mrb[0].mxu0
        %v1331 = vadd.f32 0.0, %v1330
        %v1332 = vpop.f32.mrb[0].mxu0
        %1333 = vmatprep.mubr.bf16.mxu0 0
        %1334 = vmatmul.mubr.bf16.gmra.mrb[0].mxu0 %v1255
        %v1335 = vpop.f32.mrb[0].mxu0
        %v1336 = vadd.f32 0.0, %v1335
        %v1337 = vpop.f32.mrb[0].mxu0
        %v1338 = vpop.f32.mrb[0].mxu0
        %v1339 = vadd.f32 0.0, %v1338
        %v1340 = vpop.f32.mrb[0].mxu0
        %1341 = vmatprep.mubr.bf16.mxu0 0
        %1342 = vmatmul.mubr.bf16.gmra.mrb[0].mxu0 %v1258
        %v1343 = vpop.f32.mrb[0].mxu0
        %v1344 = vadd.f32 0.0, %v1343
        %v1345 = vpop.f32.mrb[0].mxu0
        %v1346 = vpop.f32.mrb[0].mxu0
        %v1347 = vadd.f32 0.0, %v1346
        %v1348 = vpop.f32.mrb[0].mxu0
        %1349 = vmatprep.mubr.bf16.mxu0 0
        %1350 = vmatmul.mubr.bf16.gmra.mrb[0].mxu0 %v1261
        %v1351 = vpop.f32.mrb[0].mxu0
        %v1352 = vadd.f32 0.0, %v1351
        %v1353 = vpop.f32.mrb[0].mxu0
        %v1354 = vpop.f32.mrb[0].mxu0
        %v1355 = vadd.f32 0.0, %v1354
        %v1356 = vpop.f32.mrb[0].mxu0
        %1357 = vmatprep.mubr.bf16.mxu0 0
        %1358 = vmatmul.mubr.bf16.gmra.mrb[0].mxu0 %v1264
        %v1359 = vpop.f32.mrb[0].mxu0
        %v1360 = vadd.f32 0.0, %v1359
        %v1361 = vpop.f32.mrb[0].mxu0
        %v1362 = vpop.f32.mrb[0].mxu0
        %v1363 = vadd.f32 0.0, %v1362
        %v1364 = vpop.f32.mrb[0].mxu0
        %1365 = vdwg.mxu0
        %v1366 = vadd.f32 %v1167, %v1304
        %v1367 = vadd.f32 %v1168, %v1307
        %v1368 = vadd.f32 %v1169, %v1312
        %v1369 = vadd.f32 %v1170, %v1315
        %v1370 = vadd.f32 %v1171, %v1320
        %v1371 = vadd.f32 %v1172, %v1323
        %v1372 = vadd.f32 %v1173, %v1328
        %v1373 = vadd.f32 %v1174, %v1331
        %v1374 = vadd.f32 %v1175, %v1336
        %v1375 = vadd.f32 %v1176, %v1339
        %v1376 = vadd.f32 %v1177, %v1344
        %v1377 = vadd.f32 %v1178, %v1347
        %v1378 = vadd.f32 %v1179, %v1352
        %v1379 = vadd.f32 %v1180, %v1355
        %v1380 = vadd.f32 %v1181, %v1360
        %v1381 = vadd.f32 %v1182, %v1363
        %v1382 = vld [vmem:[%s1183] sm:$0xf]
        %v1383 = vld [vmem:[%s1183 + $0x4] sm:$0xf]
        %v1384 = vld [vmem:[%s1183 + $0x8] sm:$0x1]
        %v1385 = vld [vmem:[%s1183 + $0xc] sm:$0xf]
        %v1386 = vld [vmem:[%s1183 + $0x10] sm:$0xf]
        %v1387 = vld [vmem:[%s1183 + $0x14] sm:$0x1]
        %v1388 = vld [vmem:[%s1183 + $0x18] sm:$0xf]
        %v1389 = vld [vmem:[%s1183 + $0x1c] sm:$0xf]
        %v1390 = vld [vmem:[%s1183 + $0x20] sm:$0x1]
        %v1391 = vld [vmem:[%s1183 + $0x24] sm:$0xf]
        %v1392 = vld [vmem:[%s1183 + $0x28] sm:$0xf]
        %v1393 = vld [vmem:[%s1183 + $0x2c] sm:$0x1]
        %v1394 = vld [vmem:[%s1183 + $0x30] sm:$0xf]
        %v1395 = vld [vmem:[%s1183 + $0x34] sm:$0xf]
        %v1396 = vld [vmem:[%s1183 + $0x38] sm:$0x1]
        %v1397 = vld [vmem:[%s1183 + $0x3c] sm:$0xf]
        %v1398 = vld [vmem:[%s1183 + $0x40] sm:$0xf]
        %v1399 = vld [vmem:[%s1183 + $0x44] sm:$0x1]
        %v1400 = vld [vmem:[%s1183 + $0x48] sm:$0xf]
        %v1401 = vld [vmem:[%s1183 + $0x4c] sm:$0xf]
        %v1402 = vld [vmem:[%s1183 + $0x50] sm:$0x1]
        %v1403 = vld [vmem:[%s1183 + $0x54] sm:$0xf]
        %v1404 = vld [vmem:[%s1183 + $0x58] sm:$0xf]
        %v1405 = vld [vmem:[%s1183 + $0x5c] sm:$0x1]
        %v1407 = vshrl.u32 %v1382, 16
        %v1409 = vrot.slane %v1407, 4
        %v1410 = vshll.u32 %v1382, 16
        %v1412 = vrot.slane %v1410, 5
        %v1413 = vor.u32 %v1409, %v1412
        %v1414 = vrot.slane %v1413, 4
        %v1416 = vshll.u32 %v1383, 16
        %v1418 = vrot.slane %v1416, 5
        %v1419 = vsel %vm425, %v1414, %v1418
        %v1420 = vshrl.u32 %v1383, 16
        %v1422 = vrot.slane %v1420, 4
        %v1423 = vor.u32 %v1422, %v1418
        %v1424 = vrot.slane %v1423, 4
        %v1426 = vshll.u32 %v1384, 16
        %v1428 = vrot.slane %v1426, 5
        %v1429 = vsel %vm425, %v1424, %v1428
        %v1431 = vshrl.u32 %v1385, 16
        %v1433 = vrot.slane %v1431, 4
        %v1434 = vshll.u32 %v1385, 16
        %v1436 = vrot.slane %v1434, 5
        %v1437 = vor.u32 %v1433, %v1436
        %v1438 = vrot.slane %v1437, 4
        %v1440 = vshll.u32 %v1386, 16
        %v1442 = vrot.slane %v1440, 5
        %v1443 = vsel %vm425, %v1438, %v1442
        %v1444 = vshrl.u32 %v1386, 16
        %v1446 = vrot.slane %v1444, 4
        %v1447 = vor.u32 %v1446, %v1442
        %v1448 = vrot.slane %v1447, 4
        %v1450 = vshll.u32 %v1387, 16
        %v1452 = vrot.slane %v1450, 5
        %v1453 = vsel %vm425, %v1448, %v1452
        %v1455 = vshrl.u32 %v1388, 16
        %v1457 = vrot.slane %v1455, 4
        %v1458 = vshll.u32 %v1388, 16
        %v1460 = vrot.slane %v1458, 5
        %v1461 = vor.u32 %v1457, %v1460
        %v1462 = vrot.slane %v1461, 4
        %v1464 = vshll.u32 %v1389, 16
        %v1466 = vrot.slane %v1464, 5
        %v1467 = vsel %vm425, %v1462, %v1466
        %v1468 = vshrl.u32 %v1389, 16
        %v1470 = vrot.slane %v1468, 4
        %v1471 = vor.u32 %v1470, %v1466
        %v1472 = vrot.slane %v1471, 4
        %v1474 = vshll.u32 %v1390, 16
        %v1476 = vrot.slane %v1474, 5
        %v1477 = vsel %vm425, %v1472, %v1476
        %v1479 = vshrl.u32 %v1391, 16
        %v1481 = vrot.slane %v1479, 4
        %v1482 = vshll.u32 %v1391, 16
        %v1484 = vrot.slane %v1482, 5
        %v1485 = vor.u32 %v1481, %v1484
        %v1486 = vrot.slane %v1485, 4
        %v1488 = vshll.u32 %v1392, 16
        %v1490 = vrot.slane %v1488, 5
        %v1491 = vsel %vm425, %v1486, %v1490
        %v1492 = vshrl.u32 %v1392, 16
        %v1494 = vrot.slane %v1492, 4
        %v1495 = vor.u32 %v1494, %v1490
        %v1496 = vrot.slane %v1495, 4
        %v1498 = vshll.u32 %v1393, 16
        %v1500 = vrot.slane %v1498, 5
        %v1501 = vsel %vm425, %v1496, %v1500
        %v1503 = vshrl.u32 %v1394, 16
        %v1505 = vrot.slane %v1503, 4
        %v1506 = vshll.u32 %v1394, 16
        %v1508 = vrot.slane %v1506, 5
        %v1509 = vor.u32 %v1505, %v1508
        %v1510 = vrot.slane %v1509, 4
        %v1512 = vshll.u32 %v1395, 16
        %v1514 = vrot.slane %v1512, 5
        %v1515 = vsel %vm425, %v1510, %v1514
        %v1516 = vshrl.u32 %v1395, 16
        %v1518 = vrot.slane %v1516, 4
        %v1519 = vor.u32 %v1518, %v1514
        %v1520 = vrot.slane %v1519, 4
        %v1522 = vshll.u32 %v1396, 16
        %v1524 = vrot.slane %v1522, 5
        %v1525 = vsel %vm425, %v1520, %v1524
        %v1527 = vshrl.u32 %v1397, 16
        %v1529 = vrot.slane %v1527, 4
        %v1530 = vshll.u32 %v1397, 16
        %v1532 = vrot.slane %v1530, 5
        %v1533 = vor.u32 %v1529, %v1532
        %v1534 = vrot.slane %v1533, 4
        %v1536 = vshll.u32 %v1398, 16
        %v1538 = vrot.slane %v1536, 5
        %v1539 = vsel %vm425, %v1534, %v1538
        %v1540 = vshrl.u32 %v1398, 16
        %v1542 = vrot.slane %v1540, 4
        %v1543 = vor.u32 %v1542, %v1538
        %v1544 = vrot.slane %v1543, 4
        %v1546 = vshll.u32 %v1399, 16
        %v1548 = vrot.slane %v1546, 5
        %v1549 = vsel %vm425, %v1544, %v1548
        %v1551 = vshrl.u32 %v1400, 16
        %v1553 = vrot.slane %v1551, 4
        %v1554 = vshll.u32 %v1400, 16
        %v1556 = vrot.slane %v1554, 5
        %v1557 = vor.u32 %v1553, %v1556
        %v1558 = vrot.slane %v1557, 4
        %v1560 = vshll.u32 %v1401, 16
        %v1562 = vrot.slane %v1560, 5
        %v1563 = vsel %vm425, %v1558, %v1562
        %v1564 = vshrl.u32 %v1401, 16
        %v1566 = vrot.slane %v1564, 4
        %v1567 = vor.u32 %v1566, %v1562
        %v1568 = vrot.slane %v1567, 4
        %v1570 = vshll.u32 %v1402, 16
        %v1572 = vrot.slane %v1570, 5
        %v1573 = vsel %vm425, %v1568, %v1572
        %v1575 = vshrl.u32 %v1403, 16
        %v1577 = vrot.slane %v1575, 4
        %v1578 = vshll.u32 %v1403, 16
        %v1580 = vrot.slane %v1578, 5
        %v1581 = vor.u32 %v1577, %v1580
        %v1582 = vrot.slane %v1581, 4
        %v1584 = vshll.u32 %v1404, 16
        %v1586 = vrot.slane %v1584, 5
        %v1587 = vsel %vm425, %v1582, %v1586
        %v1588 = vshrl.u32 %v1404, 16
        %v1590 = vrot.slane %v1588, 4
        %v1591 = vor.u32 %v1590, %v1586
        %v1592 = vrot.slane %v1591, 4
        %v1594 = vshll.u32 %v1405, 16
        %v1596 = vrot.slane %v1594, 5
        %v1597 = vsel %vm425, %v1592, %v1596
        %s1598 = scalar_lea.vmem %s2, 8
        %v1599 = vld [vmem:[%s1598] sm:$0x3]
        %v1600 = vunpack.c.l.b16 %v1419
        %v1601 = vunpack.c.l.b16 %v1429
        %v1602 = vunpack.c.l.b16 %v1443
        %v1603 = vunpack.c.l.b16 %v1453
        %v1604 = vunpack.c.l.b16 %v1467
        %v1605 = vunpack.c.l.b16 %v1477
        %v1606 = vunpack.c.l.b16 %v1491
        %v1607 = vunpack.c.l.b16 %v1501
        %v1608 = vunpack.c.l.b16 %v1515
        %v1609 = vunpack.c.l.b16 %v1525
        %v1610 = vunpack.c.l.b16 %v1539
        %v1611 = vunpack.c.l.b16 %v1549
        %v1612 = vunpack.c.l.b16 %v1563
        %v1613 = vunpack.c.l.b16 %v1573
        %v1614 = vunpack.c.l.b16 %v1587
        %v1615 = vunpack.c.l.b16 %v1597
        %v1616 = vpack.c.b16 %v1601, %v1600
        %v1617 = vpack.c.b16 %v1603, %v1602
        %v1618 = vpack.c.b16 %v1605, %v1604
        %v1619 = vpack.c.b16 %v1607, %v1606
        %v1620 = vpack.c.b16 %v1609, %v1608
        %v1621 = vpack.c.b16 %v1611, %v1610
        %v1622 = vpack.c.b16 %v1613, %v1612
        %v1623 = vpack.c.b16 %v1615, %v1614
        %v1625 = vsel %vm644, %v1616, 0
        %v1628 = vsel %vm644, %v1617, 0
        %v1631 = vsel %vm644, %v1618, 0
        %v1634 = vsel %vm644, %v1619, 0
        %v1637 = vsel %vm644, %v1620, 0
        %v1640 = vsel %vm644, %v1621, 0
        %v1643 = vsel %vm644, %v1622, 0
        %v1646 = vsel %vm644, %v1623, 0
        %v1649 = vsel %vm669, %v1599, 0
        %1651 = vmatprep.subr.bf16.mxu0 0
        %1652 = vmatpush1.bf16.msra.mxu0 %v1649
        %1653 = vmatprep.subr.bf16.mxu0 0
        %1654 = vmatpush1.bf16.msra.mxu0 0
        %1655 = vmatprep.subr.bf16.mxu0 0
        %1656 = vmatpush1.bf16.msra.mxu0 0
        %1657 = vmatprep.subr.bf16.mxu0 0
        %1658 = vmatpush1.bf16.msra.mxu0 0
        %1659 = vmatprep.subr.bf16.mxu0 0
        %1660 = vmatpush1.bf16.msra.mxu0 0
        %1661 = vmatprep.subr.bf16.mxu0 0
        %1662 = vmatpush1.bf16.msra.mxu0 0
        %1663 = vmatprep.subr.bf16.mxu0 0
        %1664 = vmatpush1.bf16.msra.mxu0 0
        %1665 = vmatprep.subr.bf16.mxu0 0
        %1666 = vmatpush1.bf16.msra.mxu0 0
        %1667 = vmatprep.subr.bf16.mxu0 0
        %1668 = vmatpush1.bf16.msra.mxu0 0
        %1669 = vmatprep.subr.bf16.mxu0 0
        %1670 = vmatpush1.bf16.msra.mxu0 0
        %1671 = vmatprep.subr.bf16.mxu0 0
        %1672 = vmatpush1.bf16.msra.mxu0 0
        %1673 = vmatprep.subr.bf16.mxu0 0
        %1674 = vmatpush1.bf16.msra.mxu0 0
        %1675 = vmatprep.subr.bf16.mxu0 0
        %1676 = vmatpush1.bf16.msra.mxu0 0
        %1677 = vmatprep.subr.bf16.mxu0 0
        %1678 = vmatpush1.bf16.msra.mxu0 0
        %1679 = vmatprep.subr.bf16.mxu0 0
        %1680 = vmatpush1.bf16.msra.mxu0 0
        %1681 = vmatprep.subr.bf16.mxu0 0
        %1682 = vmatpush1.bf16.msra.mxu0 0
        %1683 = vmatprep.mubr.bf16.mxu0 0
        %1684 = vmatmul.mubr.bf16.gmra.mrb[0].mxu0 %v1625
        %v1685 = vpop.f32.mrb[0].mxu0
        %v1686 = vadd.f32 0.0, %v1685
        %v1687 = vpop.f32.mrb[0].mxu0
        %v1688 = vpop.f32.mrb[0].mxu0
        %v1689 = vadd.f32 0.0, %v1688
        %v1690 = vpop.f32.mrb[0].mxu0
        %1691 = vmatprep.mubr.bf16.mxu0 0
        %1692 = vmatmul.mubr.bf16.gmra.mrb[0].mxu0 %v1628
        %v1693 = vpop.f32.mrb[0].mxu0
        %v1694 = vadd.f32 0.0, %v1693
        %v1695 = vpop.f32.mrb[0].mxu0
        %v1696 = vpop.f32.mrb[0].mxu0
        %v1697 = vadd.f32 0.0, %v1696
        %v1698 = vpop.f32.mrb[0].mxu0
        %1699 = vmatprep.mubr.bf16.mxu0 0
        %1700 = vmatmul.mubr.bf16.gmra.mrb[0].mxu0 %v1631
        %v1701 = vpop.f32.mrb[0].mxu0
        %v1702 = vadd.f32 0.0, %v1701
        %v1703 = vpop.f32.mrb[0].mxu0
        %v1704 = vpop.f32.mrb[0].mxu0
        %v1705 = vadd.f32 0.0, %v1704
        %v1706 = vpop.f32.mrb[0].mxu0
        %1707 = vmatprep.mubr.bf16.mxu0 0
        %1708 = vmatmul.mubr.bf16.gmra.mrb[0].mxu0 %v1634
        %v1709 = vpop.f32.mrb[0].mxu0
        %v1710 = vadd.f32 0.0, %v1709
        %v1711 = vpop.f32.mrb[0].mxu0
        %v1712 = vpop.f32.mrb[0].mxu0
        %v1713 = vadd.f32 0.0, %v1712
        %v1714 = vpop.f32.mrb[0].mxu0
        %1715 = vmatprep.mubr.bf16.mxu0 0
        %1716 = vmatmul.mubr.bf16.gmra.mrb[0].mxu0 %v1637
        %v1717 = vpop.f32.mrb[0].mxu0
        %v1718 = vadd.f32 0.0, %v1717
        %v1719 = vpop.f32.mrb[0].mxu0
        %v1720 = vpop.f32.mrb[0].mxu0
        %v1721 = vadd.f32 0.0, %v1720
        %v1722 = vpop.f32.mrb[0].mxu0
        %1723 = vmatprep.mubr.bf16.mxu0 0
        %1724 = vmatmul.mubr.bf16.gmra.mrb[0].mxu0 %v1640
        %v1725 = vpop.f32.mrb[0].mxu0
        %v1726 = vadd.f32 0.0, %v1725
        %v1727 = vpop.f32.mrb[0].mxu0
        %v1728 = vpop.f32.mrb[0].mxu0
        %v1729 = vadd.f32 0.0, %v1728
        %v1730 = vpop.f32.mrb[0].mxu0
        %1731 = vmatprep.mubr.bf16.mxu0 0
        %1732 = vmatmul.mubr.bf16.gmra.mrb[0].mxu0 %v1643
        %v1733 = vpop.f32.mrb[0].mxu0
        %v1734 = vadd.f32 0.0, %v1733
        %v1735 = vpop.f32.mrb[0].mxu0
        %v1736 = vpop.f32.mrb[0].mxu0
        %v1737 = vadd.f32 0.0, %v1736
        %v1738 = vpop.f32.mrb[0].mxu0
        %1739 = vmatprep.mubr.bf16.mxu0 0
        %1740 = vmatmul.mubr.bf16.gmra.mrb[0].mxu0 %v1646
        %v1741 = vpop.f32.mrb[0].mxu0
        %v1742 = vadd.f32 0.0, %v1741
        %v1743 = vpop.f32.mrb[0].mxu0
        %v1744 = vpop.f32.mrb[0].mxu0
        %v1745 = vadd.f32 0.0, %v1744
        %v1746 = vpop.f32.mrb[0].mxu0
        %1747 = vdwg.mxu0
        %v1748 = vadd.f32 %v1366, %v1686
        %v1749 = vadd.f32 %v1367, %v1689
        %v1750 = vadd.f32 %v1368, %v1694
        %v1751 = vadd.f32 %v1369, %v1697
        %v1752 = vadd.f32 %v1370, %v1702
        %v1753 = vadd.f32 %v1371, %v1705
        %v1754 = vadd.f32 %v1372, %v1710
        %v1755 = vadd.f32 %v1373, %v1713
        %v1756 = vadd.f32 %v1374, %v1718
        %v1757 = vadd.f32 %v1375, %v1721
        %v1758 = vadd.f32 %v1376, %v1726
        %v1759 = vadd.f32 %v1377, %v1729
        %v1760 = vadd.f32 %v1378, %v1734
        %v1761 = vadd.f32 %v1379, %v1737
        %v1762 = vadd.f32 %v1380, %v1742
        %v1763 = vadd.f32 %v1381, %v1745
        %v1764 = vld [vmem:[%s1183] sm:$0xe]
        %v1765 = vld [vmem:[%s1183 + $0xc] sm:$0xe]
        %v1766 = vld [vmem:[%s1183 + $0x18] sm:$0xe]
        %v1767 = vld [vmem:[%s1183 + $0x24] sm:$0xe]
        %v1768 = vld [vmem:[%s1183 + $0x30] sm:$0xe]
        %v1769 = vld [vmem:[%s1183 + $0x3c] sm:$0xe]
        %v1770 = vld [vmem:[%s1183 + $0x48] sm:$0xe]
        %v1771 = vld [vmem:[%s1183 + $0x54] sm:$0xe]
        %v1796 = vrot.slane %v1764, 5
        %v1797 = vrot.slane %v1796, 4
        %v1798 = vrot.slane %v1383, 5
        %v1799 = vsel %vm960, %v1797, %v1798
        %v1800 = vrot.slane %v1798, 4
        %v1801 = vrot.slane %v1384, 5
        %v1802 = vsel %vm960, %v1800, %v1801
        %v1803 = vrot.slane %v1765, 5
        %v1804 = vrot.slane %v1803, 4
        %v1805 = vrot.slane %v1386, 5
        %v1806 = vsel %vm960, %v1804, %v1805
        %v1807 = vrot.slane %v1805, 4
        %v1808 = vrot.slane %v1387, 5
        %v1809 = vsel %vm960, %v1807, %v1808
        %v1810 = vrot.slane %v1766, 5
        %v1811 = vrot.slane %v1810, 4
        %v1812 = vrot.slane %v1389, 5
        %v1813 = vsel %vm960, %v1811, %v1812
        %v1814 = vrot.slane %v1812, 4
        %v1815 = vrot.slane %v1390, 5
        %v1816 = vsel %vm960, %v1814, %v1815
        %v1817 = vrot.slane %v1767, 5
        %v1818 = vrot.slane %v1817, 4
        %v1819 = vrot.slane %v1392, 5
        %v1820 = vsel %vm960, %v1818, %v1819
        %v1821 = vrot.slane %v1819, 4
        %v1822 = vrot.slane %v1393, 5
        %v1823 = vsel %vm960, %v1821, %v1822
        %v1824 = vrot.slane %v1768, 5
        %v1825 = vrot.slane %v1824, 4
        %v1826 = vrot.slane %v1395, 5
        %v1827 = vsel %vm960, %v1825, %v1826
        %v1828 = vrot.slane %v1826, 4
        %v1829 = vrot.slane %v1396, 5
        %v1830 = vsel %vm960, %v1828, %v1829
        %v1831 = vrot.slane %v1769, 5
        %v1832 = vrot.slane %v1831, 4
        %v1833 = vrot.slane %v1398, 5
        %v1834 = vsel %vm960, %v1832, %v1833
        %v1835 = vrot.slane %v1833, 4
        %v1836 = vrot.slane %v1399, 5
        %v1837 = vsel %vm960, %v1835, %v1836
        %v1838 = vrot.slane %v1770, 5
        %v1839 = vrot.slane %v1838, 4
        %v1840 = vrot.slane %v1401, 5
        %v1841 = vsel %vm960, %v1839, %v1840
        %v1842 = vrot.slane %v1840, 4
        %v1843 = vrot.slane %v1402, 5
        %v1844 = vsel %vm960, %v1842, %v1843
        %v1845 = vrot.slane %v1771, 5
        %v1846 = vrot.slane %v1845, 4
        %v1847 = vrot.slane %v1404, 5
        %v1848 = vsel %vm960, %v1846, %v1847
        %v1849 = vrot.slane %v1847, 4
        %v1850 = vrot.slane %v1405, 5
        %v1851 = vsel %vm960, %v1849, %v1850
        %s1852 = scalar_lea.vmem %s2, 10
        %v1853 = vld [vmem:[%s1852] sm:$0x3]
        %v1854 = vunpack.c.l.b16 %v1799
        %v1855 = vunpack.c.l.b16 %v1802
        %v1856 = vunpack.c.l.b16 %v1806
        %v1857 = vunpack.c.l.b16 %v1809
        %v1858 = vunpack.c.l.b16 %v1813
        %v1859 = vunpack.c.l.b16 %v1816
        %v1860 = vunpack.c.l.b16 %v1820
        %v1861 = vunpack.c.l.b16 %v1823
        %v1862 = vunpack.c.l.b16 %v1827
        %v1863 = vunpack.c.l.b16 %v1830
        %v1864 = vunpack.c.l.b16 %v1834
        %v1865 = vunpack.c.l.b16 %v1837
        %v1866 = vunpack.c.l.b16 %v1841
        %v1867 = vunpack.c.l.b16 %v1844
        %v1868 = vunpack.c.l.b16 %v1848
        %v1869 = vunpack.c.l.b16 %v1851
        %v1870 = vpack.c.b16 %v1855, %v1854
        %v1871 = vpack.c.b16 %v1857, %v1856
        %v1872 = vpack.c.b16 %v1859, %v1858
        %v1873 = vpack.c.b16 %v1861, %v1860
        %v1874 = vpack.c.b16 %v1863, %v1862
        %v1875 = vpack.c.b16 %v1865, %v1864
        %v1876 = vpack.c.b16 %v1867, %v1866
        %v1877 = vpack.c.b16 %v1869, %v1868
        %v1879 = vsel %vm644, %v1870, 0
        %v1882 = vsel %vm644, %v1871, 0
        %v1885 = vsel %vm644, %v1872, 0
        %v1888 = vsel %vm644, %v1873, 0
        %v1891 = vsel %vm644, %v1874, 0
        %v1894 = vsel %vm644, %v1875, 0
        %v1897 = vsel %vm644, %v1876, 0
        %v1900 = vsel %vm644, %v1877, 0
        %v1903 = vsel %vm669, %v1853, 0
        %1905 = vmatprep.subr.bf16.mxu0 0
        %1906 = vmatpush1.bf16.msra.mxu0 %v1903
        %1907 = vmatprep.subr.bf16.mxu0 0
        %1908 = vmatpush1.bf16.msra.mxu0 0
        %1909 = vmatprep.subr.bf16.mxu0 0
        %1910 = vmatpush1.bf16.msra.mxu0 0
        %1911 = vmatprep.subr.bf16.mxu0 0
        %1912 = vmatpush1.bf16.msra.mxu0 0
        %1913 = vmatprep.subr.bf16.mxu0 0
        %1914 = vmatpush1.bf16.msra.mxu0 0
        %1915 = vmatprep.subr.bf16.mxu0 0
        %1916 = vmatpush1.bf16.msra.mxu0 0
        %1917 = vmatprep.subr.bf16.mxu0 0
        %1918 = vmatpush1.bf16.msra.mxu0 0
        %1919 = vmatprep.subr.bf16.mxu0 0
        %1920 = vmatpush1.bf16.msra.mxu0 0
        %1921 = vmatprep.subr.bf16.mxu0 0
        %1922 = vmatpush1.bf16.msra.mxu0 0
        %1923 = vmatprep.subr.bf16.mxu0 0
        %1924 = vmatpush1.bf16.msra.mxu0 0
        %1925 = vmatprep.subr.bf16.mxu0 0
        %1926 = vmatpush1.bf16.msra.mxu0 0
        %1927 = vmatprep.subr.bf16.mxu0 0
        %1928 = vmatpush1.bf16.msra.mxu0 0
        %1929 = vmatprep.subr.bf16.mxu0 0
        %1930 = vmatpush1.bf16.msra.mxu0 0
        %1931 = vmatprep.subr.bf16.mxu0 0
        %1932 = vmatpush1.bf16.msra.mxu0 0
        %1933 = vmatprep.subr.bf16.mxu0 0
        %1934 = vmatpush1.bf16.msra.mxu0 0
        %1935 = vmatprep.subr.bf16.mxu0 0
        %1936 = vmatpush1.bf16.msra.mxu0 0
        %1937 = vmatprep.mubr.bf16.mxu0 0
        %1938 = vmatmul.mubr.bf16.gmra.mrb[0].mxu0 %v1879
        %v1939 = vpop.f32.mrb[0].mxu0
        %v1940 = vadd.f32 0.0, %v1939
        %v1941 = vpop.f32.mrb[0].mxu0
        %v1942 = vpop.f32.mrb[0].mxu0
        %v1943 = vadd.f32 0.0, %v1942
        %v1944 = vpop.f32.mrb[0].mxu0
        %1945 = vmatprep.mubr.bf16.mxu0 0
        %1946 = vmatmul.mubr.bf16.gmra.mrb[0].mxu0 %v1882
        %v1947 = vpop.f32.mrb[0].mxu0
        %v1948 = vadd.f32 0.0, %v1947
        %v1949 = vpop.f32.mrb[0].mxu0
        %v1950 = vpop.f32.mrb[0].mxu0
        %v1951 = vadd.f32 0.0, %v1950
        %v1952 = vpop.f32.mrb[0].mxu0
        %1953 = vmatprep.mubr.bf16.mxu0 0
        %1954 = vmatmul.mubr.bf16.gmra.mrb[0].mxu0 %v1885
        %v1955 = vpop.f32.mrb[0].mxu0
        %v1956 = vadd.f32 0.0, %v1955
        %v1957 = vpop.f32.mrb[0].mxu0
        %v1958 = vpop.f32.mrb[0].mxu0
        %v1959 = vadd.f32 0.0, %v1958
        %v1960 = vpop.f32.mrb[0].mxu0
        %1961 = vmatprep.mubr.bf16.mxu0 0
        %1962 = vmatmul.mubr.bf16.gmra.mrb[0].mxu0 %v1888
        %v1963 = vpop.f32.mrb[0].mxu0
        %v1964 = vadd.f32 0.0, %v1963
        %v1965 = vpop.f32.mrb[0].mxu0
        %v1966 = vpop.f32.mrb[0].mxu0
        %v1967 = vadd.f32 0.0, %v1966
        %v1968 = vpop.f32.mrb[0].mxu0
        %1969 = vmatprep.mubr.bf16.mxu0 0
        %1970 = vmatmul.mubr.bf16.gmra.mrb[0].mxu0 %v1891
        %v1971 = vpop.f32.mrb[0].mxu0
        %v1972 = vadd.f32 0.0, %v1971
        %v1973 = vpop.f32.mrb[0].mxu0
        %v1974 = vpop.f32.mrb[0].mxu0
        %v1975 = vadd.f32 0.0, %v1974
        %v1976 = vpop.f32.mrb[0].mxu0
        %1977 = vmatprep.mubr.bf16.mxu0 0
        %1978 = vmatmul.mubr.bf16.gmra.mrb[0].mxu0 %v1894
        %v1979 = vpop.f32.mrb[0].mxu0
        %v1980 = vadd.f32 0.0, %v1979
        %v1981 = vpop.f32.mrb[0].mxu0
        %v1982 = vpop.f32.mrb[0].mxu0
        %v1983 = vadd.f32 0.0, %v1982
        %v1984 = vpop.f32.mrb[0].mxu0
        %1985 = vmatprep.mubr.bf16.mxu0 0
        %1986 = vmatmul.mubr.bf16.gmra.mrb[0].mxu0 %v1897
        %v1987 = vpop.f32.mrb[0].mxu0
        %v1988 = vadd.f32 0.0, %v1987
        %v1989 = vpop.f32.mrb[0].mxu0
        %v1990 = vpop.f32.mrb[0].mxu0
        %v1991 = vadd.f32 0.0, %v1990
        %v1992 = vpop.f32.mrb[0].mxu0
        %1993 = vmatprep.mubr.bf16.mxu0 0
        %1994 = vmatmul.mubr.bf16.gmra.mrb[0].mxu0 %v1900
        %v1995 = vpop.f32.mrb[0].mxu0
        %v1996 = vadd.f32 0.0, %v1995
        %v1997 = vpop.f32.mrb[0].mxu0
        %v1998 = vpop.f32.mrb[0].mxu0
        %v1999 = vadd.f32 0.0, %v1998
        %v2000 = vpop.f32.mrb[0].mxu0
        %2001 = vdwg.mxu0
        %v2002 = vadd.f32 %v1748, %v1940
        %v2003 = vadd.f32 %v1749, %v1943
        %v2004 = vadd.f32 %v1750, %v1948
        %v2005 = vadd.f32 %v1751, %v1951
        %v2006 = vadd.f32 %v1752, %v1956
        %v2007 = vadd.f32 %v1753, %v1959
        %v2008 = vadd.f32 %v1754, %v1964
        %v2009 = vadd.f32 %v1755, %v1967
        %v2010 = vadd.f32 %v1756, %v1972
        %v2011 = vadd.f32 %v1757, %v1975
        %v2012 = vadd.f32 %v1758, %v1980
        %v2013 = vadd.f32 %v1759, %v1983
        %v2014 = vadd.f32 %v1760, %v1988
        %v2015 = vadd.f32 %v1761, %v1991
        %v2016 = vadd.f32 %v1762, %v1996
        %v2017 = vadd.f32 %v1763, %v1999
        %s2018 = scalar_lea.vmem [#allocation2], 24
        %v2019 = vld [vmem:[%s2018] sm:$0xf]
        %v2020 = vld [vmem:[%s2018 + $0x4] sm:$0xf]
        %v2021 = vld [vmem:[%s2018 + $0xc] sm:$0xf]
        %v2022 = vld [vmem:[%s2018 + $0x10] sm:$0xf]
        %v2023 = vld [vmem:[%s2018 + $0x18] sm:$0xf]
        %v2024 = vld [vmem:[%s2018 + $0x1c] sm:$0xf]
        %v2025 = vld [vmem:[%s2018 + $0x24] sm:$0xf]
        %v2026 = vld [vmem:[%s2018 + $0x28] sm:$0xf]
        %v2027 = vld [vmem:[%s2018 + $0x30] sm:$0xf]
        %v2028 = vld [vmem:[%s2018 + $0x34] sm:$0xf]
        %v2029 = vld [vmem:[%s2018 + $0x3c] sm:$0xf]
        %v2030 = vld [vmem:[%s2018 + $0x40] sm:$0xf]
        %v2031 = vld [vmem:[%s2018 + $0x48] sm:$0xf]
        %v2032 = vld [vmem:[%s2018 + $0x4c] sm:$0xf]
        %v2033 = vld [vmem:[%s2018 + $0x54] sm:$0xf]
        %v2034 = vld [vmem:[%s2018 + $0x58] sm:$0xf]
        %s2035 = scalar_lea.vmem %s2, 12
        %v2036 = vld [vmem:[%s2035] sm:$0x3]
        %v2053 = vunpack.c.l.b16 %v2019
        %v2054 = vunpack.c.l.b16 %v2020
        %v2055 = vunpack.c.l.b16 %v2021
        %v2056 = vunpack.c.l.b16 %v2022
        %v2057 = vunpack.c.l.b16 %v2023
        %v2058 = vunpack.c.l.b16 %v2024
        %v2059 = vunpack.c.l.b16 %v2025
        %v2060 = vunpack.c.l.b16 %v2026
        %v2061 = vunpack.c.l.b16 %v2027
        %v2062 = vunpack.c.l.b16 %v2028
        %v2063 = vunpack.c.l.b16 %v2029
        %v2064 = vunpack.c.l.b16 %v2030
        %v2065 = vunpack.c.l.b16 %v2031
        %v2066 = vunpack.c.l.b16 %v2032
        %v2067 = vunpack.c.l.b16 %v2033
        %v2068 = vunpack.c.l.b16 %v2034
        %v2069 = vpack.c.b16 %v2054, %v2053
        %v2070 = vpack.c.b16 %v2056, %v2055
        %v2071 = vpack.c.b16 %v2058, %v2057
        %v2072 = vpack.c.b16 %v2060, %v2059
        %v2073 = vpack.c.b16 %v2062, %v2061
        %v2074 = vpack.c.b16 %v2064, %v2063
        %v2075 = vpack.c.b16 %v2066, %v2065
        %v2076 = vpack.c.b16 %v2068, %v2067
        %v2078 = vsel %vm644, %v2069, 0
        %v2081 = vsel %vm644, %v2070, 0
        %v2084 = vsel %vm644, %v2071, 0
        %v2087 = vsel %vm644, %v2072, 0
        %v2090 = vsel %vm644, %v2073, 0
        %v2093 = vsel %vm644, %v2074, 0
        %v2096 = vsel %vm644, %v2075, 0
        %v2099 = vsel %vm644, %v2076, 0
        %v2102 = vsel %vm669, %v2036, 0
        %2104 = vmatprep.subr.bf16.mxu0 0
        %2105 = vmatpush1.bf16.msra.mxu0 %v2102
        %2106 = vmatprep.subr.bf16.mxu0 0
        %2107 = vmatpush1.bf16.msra.mxu0 0
        %2108 = vmatprep.subr.bf16.mxu0 0
        %2109 = vmatpush1.bf16.msra.mxu0 0
        %2110 = vmatprep.subr.bf16.mxu0 0
        %2111 = vmatpush1.bf16.msra.mxu0 0
        %2112 = vmatprep.subr.bf16.mxu0 0
        %2113 = vmatpush1.bf16.msra.mxu0 0
        %2114 = vmatprep.subr.bf16.mxu0 0
        %2115 = vmatpush1.bf16.msra.mxu0 0
        %2116 = vmatprep.subr.bf16.mxu0 0
        %2117 = vmatpush1.bf16.msra.mxu0 0
        %2118 = vmatprep.subr.bf16.mxu0 0
        %2119 = vmatpush1.bf16.msra.mxu0 0
        %2120 = vmatprep.subr.bf16.mxu0 0
        %2121 = vmatpush1.bf16.msra.mxu0 0
        %2122 = vmatprep.subr.bf16.mxu0 0
        %2123 = vmatpush1.bf16.msra.mxu0 0
        %2124 = vmatprep.subr.bf16.mxu0 0
        %2125 = vmatpush1.bf16.msra.mxu0 0
        %2126 = vmatprep.subr.bf16.mxu0 0
        %2127 = vmatpush1.bf16.msra.mxu0 0
        %2128 = vmatprep.subr.bf16.mxu0 0
        %2129 = vmatpush1.bf16.msra.mxu0 0
        %2130 = vmatprep.subr.bf16.mxu0 0
        %2131 = vmatpush1.bf16.msra.mxu0 0
        %2132 = vmatprep.subr.bf16.mxu0 0
        %2133 = vmatpush1.bf16.msra.mxu0 0
        %2134 = vmatprep.subr.bf16.mxu0 0
        %2135 = vmatpush1.bf16.msra.mxu0 0
        %2136 = vmatprep.mubr.bf16.mxu0 0
        %2137 = vmatmul.mubr.bf16.gmra.mrb[0].mxu0 %v2078
        %v2138 = vpop.f32.mrb[0].mxu0
        %v2139 = vadd.f32 0.0, %v2138
        %v2140 = vpop.f32.mrb[0].mxu0
        %v2141 = vpop.f32.mrb[0].mxu0
        %v2142 = vadd.f32 0.0, %v2141
        %v2143 = vpop.f32.mrb[0].mxu0
        %2144 = vmatprep.mubr.bf16.mxu0 0
        %2145 = vmatmul.mubr.bf16.gmra.mrb[0].mxu0 %v2081
        %v2146 = vpop.f32.mrb[0].mxu0
        %v2147 = vadd.f32 0.0, %v2146
        %v2148 = vpop.f32.mrb[0].mxu0
        %v2149 = vpop.f32.mrb[0].mxu0
        %v2150 = vadd.f32 0.0, %v2149
        %v2151 = vpop.f32.mrb[0].mxu0
        %2152 = vmatprep.mubr.bf16.mxu0 0
        %2153 = vmatmul.mubr.bf16.gmra.mrb[0].mxu0 %v2084
        %v2154 = vpop.f32.mrb[0].mxu0
        %v2155 = vadd.f32 0.0, %v2154
        %v2156 = vpop.f32.mrb[0].mxu0
        %v2157 = vpop.f32.mrb[0].mxu0
        %v2158 = vadd.f32 0.0, %v2157
        %v2159 = vpop.f32.mrb[0].mxu0
        %2160 = vmatprep.mubr.bf16.mxu0 0
        %2161 = vmatmul.mubr.bf16.gmra.mrb[0].mxu0 %v2087
        %v2162 = vpop.f32.mrb[0].mxu0
        %v2163 = vadd.f32 0.0, %v2162
        %v2164 = vpop.f32.mrb[0].mxu0
        %v2165 = vpop.f32.mrb[0].mxu0
        %v2166 = vadd.f32 0.0, %v2165
        %v2167 = vpop.f32.mrb[0].mxu0
        %2168 = vmatprep.mubr.bf16.mxu0 0
        %2169 = vmatmul.mubr.bf16.gmra.mrb[0].mxu0 %v2090
        %v2170 = vpop.f32.mrb[0].mxu0
        %v2171 = vadd.f32 0.0, %v2170
        %v2172 = vpop.f32.mrb[0].mxu0
        %v2173 = vpop.f32.mrb[0].mxu0
        %v2174 = vadd.f32 0.0, %v2173
        %v2175 = vpop.f32.mrb[0].mxu0
        %2176 = vmatprep.mubr.bf16.mxu0 0
        %2177 = vmatmul.mubr.bf16.gmra.mrb[0].mxu0 %v2093
        %v2178 = vpop.f32.mrb[0].mxu0
        %v2179 = vadd.f32 0.0, %v2178
        %v2180 = vpop.f32.mrb[0].mxu0
        %v2181 = vpop.f32.mrb[0].mxu0
        %v2182 = vadd.f32 0.0, %v2181
        %v2183 = vpop.f32.mrb[0].mxu0
        %2184 = vmatprep.mubr.bf16.mxu0 0
        %2185 = vmatmul.mubr.bf16.gmra.mrb[0].mxu0 %v2096
        %v2186 = vpop.f32.mrb[0].mxu0
        %v2187 = vadd.f32 0.0, %v2186
        %v2188 = vpop.f32.mrb[0].mxu0
        %v2189 = vpop.f32.mrb[0].mxu0
        %v2190 = vadd.f32 0.0, %v2189
        %v2191 = vpop.f32.mrb[0].mxu0
        %2192 = vmatprep.mubr.bf16.mxu0 0
        %2193 = vmatmul.mubr.bf16.gmra.mrb[0].mxu0 %v2099
        %v2194 = vpop.f32.mrb[0].mxu0
        %v2195 = vadd.f32 0.0, %v2194
        %v2196 = vpop.f32.mrb[0].mxu0
        %v2197 = vpop.f32.mrb[0].mxu0
        %v2198 = vadd.f32 0.0, %v2197
        %v2199 = vpop.f32.mrb[0].mxu0
        %2200 = vdwg.mxu0
        %v2201 = vadd.f32 %v2002, %v2139
        %v2202 = vadd.f32 %v2003, %v2142
        %v2203 = vadd.f32 %v2004, %v2147
        %v2204 = vadd.f32 %v2005, %v2150
        %v2205 = vadd.f32 %v2006, %v2155
        %v2206 = vadd.f32 %v2007, %v2158
        %v2207 = vadd.f32 %v2008, %v2163
        %v2208 = vadd.f32 %v2009, %v2166
        %v2209 = vadd.f32 %v2010, %v2171
        %v2210 = vadd.f32 %v2011, %v2174
        %v2211 = vadd.f32 %v2012, %v2179
        %v2212 = vadd.f32 %v2013, %v2182
        %v2213 = vadd.f32 %v2014, %v2187
        %v2214 = vadd.f32 %v2015, %v2190
        %v2215 = vadd.f32 %v2016, %v2195
        %v2216 = vadd.f32 %v2017, %v2198
        %v2217 = vld [vmem:[%s2018] sm:$0xf]
        %v2218 = vld [vmem:[%s2018 + $0x4] sm:$0xf]
        %v2219 = vld [vmem:[%s2018 + $0x8] sm:$0x1]
        %v2220 = vld [vmem:[%s2018 + $0xc] sm:$0xf]
        %v2221 = vld [vmem:[%s2018 + $0x10] sm:$0xf]
        %v2222 = vld [vmem:[%s2018 + $0x14] sm:$0x1]
        %v2223 = vld [vmem:[%s2018 + $0x18] sm:$0xf]
        %v2224 = vld [vmem:[%s2018 + $0x1c] sm:$0xf]
        %v2225 = vld [vmem:[%s2018 + $0x20] sm:$0x1]
        %v2226 = vld [vmem:[%s2018 + $0x24] sm:$0xf]
        %v2227 = vld [vmem:[%s2018 + $0x28] sm:$0xf]
        %v2228 = vld [vmem:[%s2018 + $0x2c] sm:$0x1]
        %v2229 = vld [vmem:[%s2018 + $0x30] sm:$0xf]
        %v2230 = vld [vmem:[%s2018 + $0x34] sm:$0xf]
        %v2231 = vld [vmem:[%s2018 + $0x38] sm:$0x1]
        %v2232 = vld [vmem:[%s2018 + $0x3c] sm:$0xf]
        %v2233 = vld [vmem:[%s2018 + $0x40] sm:$0xf]
        %v2234 = vld [vmem:[%s2018 + $0x44] sm:$0x1]
        %v2235 = vld [vmem:[%s2018 + $0x48] sm:$0xf]
        %v2236 = vld [vmem:[%s2018 + $0x4c] sm:$0xf]
        %v2237 = vld [vmem:[%s2018 + $0x50] sm:$0x1]
        %v2238 = vld [vmem:[%s2018 + $0x54] sm:$0xf]
        %v2239 = vld [vmem:[%s2018 + $0x58] sm:$0xf]
        %v2240 = vld [vmem:[%s2018 + $0x5c] sm:$0x1]
        %v2242 = vshrl.u32 %v2217, 16
        %v2244 = vrot.slane %v2242, 4
        %v2245 = vshll.u32 %v2217, 16
        %v2247 = vrot.slane %v2245, 5
        %v2248 = vor.u32 %v2244, %v2247
        %v2249 = vrot.slane %v2248, 4
        %v2251 = vshll.u32 %v2218, 16
        %v2253 = vrot.slane %v2251, 5
        %v2254 = vsel %vm425, %v2249, %v2253
        %v2255 = vshrl.u32 %v2218, 16
        %v2257 = vrot.slane %v2255, 4
        %v2258 = vor.u32 %v2257, %v2253
        %v2259 = vrot.slane %v2258, 4
        %v2261 = vshll.u32 %v2219, 16
        %v2263 = vrot.slane %v2261, 5
        %v2264 = vsel %vm425, %v2259, %v2263
        %v2266 = vshrl.u32 %v2220, 16
        %v2268 = vrot.slane %v2266, 4
        %v2269 = vshll.u32 %v2220, 16
        %v2271 = vrot.slane %v2269, 5
        %v2272 = vor.u32 %v2268, %v2271
        %v2273 = vrot.slane %v2272, 4
        %v2275 = vshll.u32 %v2221, 16
        %v2277 = vrot.slane %v2275, 5
        %v2278 = vsel %vm425, %v2273, %v2277
        %v2279 = vshrl.u32 %v2221, 16
        %v2281 = vrot.slane %v2279, 4
        %v2282 = vor.u32 %v2281, %v2277
        %v2283 = vrot.slane %v2282, 4
        %v2285 = vshll.u32 %v2222, 16
        %v2287 = vrot.slane %v2285, 5
        %v2288 = vsel %vm425, %v2283, %v2287
        %v2290 = vshrl.u32 %v2223, 16
        %v2292 = vrot.slane %v2290, 4
        %v2293 = vshll.u32 %v2223, 16
        %v2295 = vrot.slane %v2293, 5
        %v2296 = vor.u32 %v2292, %v2295
        %v2297 = vrot.slane %v2296, 4
        %v2299 = vshll.u32 %v2224, 16
        %v2301 = vrot.slane %v2299, 5
        %v2302 = vsel %vm425, %v2297, %v2301
        %v2303 = vshrl.u32 %v2224, 16
        %v2305 = vrot.slane %v2303, 4
        %v2306 = vor.u32 %v2305, %v2301
        %v2307 = vrot.slane %v2306, 4
        %v2309 = vshll.u32 %v2225, 16
        %v2311 = vrot.slane %v2309, 5
        %v2312 = vsel %vm425, %v2307, %v2311
        %v2314 = vshrl.u32 %v2226, 16
        %v2316 = vrot.slane %v2314, 4
        %v2317 = vshll.u32 %v2226, 16
        %v2319 = vrot.slane %v2317, 5
        %v2320 = vor.u32 %v2316, %v2319
        %v2321 = vrot.slane %v2320, 4
        %v2323 = vshll.u32 %v2227, 16
        %v2325 = vrot.slane %v2323, 5
        %v2326 = vsel %vm425, %v2321, %v2325
        %v2327 = vshrl.u32 %v2227, 16
        %v2329 = vrot.slane %v2327, 4
        %v2330 = vor.u32 %v2329, %v2325
        %v2331 = vrot.slane %v2330, 4
        %v2333 = vshll.u32 %v2228, 16
        %v2335 = vrot.slane %v2333, 5
        %v2336 = vsel %vm425, %v2331, %v2335
        %v2338 = vshrl.u32 %v2229, 16
        %v2340 = vrot.slane %v2338, 4
        %v2341 = vshll.u32 %v2229, 16
        %v2343 = vrot.slane %v2341, 5
        %v2344 = vor.u32 %v2340, %v2343
        %v2345 = vrot.slane %v2344, 4
        %v2347 = vshll.u32 %v2230, 16
        %v2349 = vrot.slane %v2347, 5
        %v2350 = vsel %vm425, %v2345, %v2349
        %v2351 = vshrl.u32 %v2230, 16
        %v2353 = vrot.slane %v2351, 4
        %v2354 = vor.u32 %v2353, %v2349
        %v2355 = vrot.slane %v2354, 4
        %v2357 = vshll.u32 %v2231, 16
        %v2359 = vrot.slane %v2357, 5
        %v2360 = vsel %vm425, %v2355, %v2359
        %v2362 = vshrl.u32 %v2232, 16
        %v2364 = vrot.slane %v2362, 4
        %v2365 = vshll.u32 %v2232, 16
        %v2367 = vrot.slane %v2365, 5
        %v2368 = vor.u32 %v2364, %v2367
        %v2369 = vrot.slane %v2368, 4
        %v2371 = vshll.u32 %v2233, 16
        %v2373 = vrot.slane %v2371, 5
        %v2374 = vsel %vm425, %v2369, %v2373
        %v2375 = vshrl.u32 %v2233, 16
        %v2377 = vrot.slane %v2375, 4
        %v2378 = vor.u32 %v2377, %v2373
        %v2379 = vrot.slane %v2378, 4
        %v2381 = vshll.u32 %v2234, 16
        %v2383 = vrot.slane %v2381, 5
        %v2384 = vsel %vm425, %v2379, %v2383
        %v2386 = vshrl.u32 %v2235, 16
        %v2388 = vrot.slane %v2386, 4
        %v2389 = vshll.u32 %v2235, 16
        %v2391 = vrot.slane %v2389, 5
        %v2392 = vor.u32 %v2388, %v2391
        %v2393 = vrot.slane %v2392, 4
        %v2395 = vshll.u32 %v2236, 16
        %v2397 = vrot.slane %v2395, 5
        %v2398 = vsel %vm425, %v2393, %v2397
        %v2399 = vshrl.u32 %v2236, 16
        %v2401 = vrot.slane %v2399, 4
        %v2402 = vor.u32 %v2401, %v2397
        %v2403 = vrot.slane %v2402, 4
        %v2405 = vshll.u32 %v2237, 16
        %v2407 = vrot.slane %v2405, 5
        %v2408 = vsel %vm425, %v2403, %v2407
        %v2410 = vshrl.u32 %v2238, 16
        %v2412 = vrot.slane %v2410, 4
        %v2413 = vshll.u32 %v2238, 16
        %v2415 = vrot.slane %v2413, 5
        %v2416 = vor.u32 %v2412, %v2415
        %v2417 = vrot.slane %v2416, 4
        %v2419 = vshll.u32 %v2239, 16
        %v2421 = vrot.slane %v2419, 5
        %v2422 = vsel %vm425, %v2417, %v2421
        %v2423 = vshrl.u32 %v2239, 16
        %v2425 = vrot.slane %v2423, 4
        %v2426 = vor.u32 %v2425, %v2421
        %v2427 = vrot.slane %v2426, 4
        %v2429 = vshll.u32 %v2240, 16
        %v2431 = vrot.slane %v2429, 5
        %v2432 = vsel %vm425, %v2427, %v2431
        %s2433 = scalar_lea.vmem %s2, 14
        %v2434 = vld [vmem:[%s2433] sm:$0x3]
        %v2435 = vunpack.c.l.b16 %v2254
        %v2436 = vunpack.c.l.b16 %v2264
        %v2437 = vunpack.c.l.b16 %v2278
        %v2438 = vunpack.c.l.b16 %v2288
        %v2439 = vunpack.c.l.b16 %v2302
        %v2440 = vunpack.c.l.b16 %v2312
        %v2441 = vunpack.c.l.b16 %v2326
        %v2442 = vunpack.c.l.b16 %v2336
        %v2443 = vunpack.c.l.b16 %v2350
        %v2444 = vunpack.c.l.b16 %v2360
        %v2445 = vunpack.c.l.b16 %v2374
        %v2446 = vunpack.c.l.b16 %v2384
        %v2447 = vunpack.c.l.b16 %v2398
        %v2448 = vunpack.c.l.b16 %v2408
        %v2449 = vunpack.c.l.b16 %v2422
        %v2450 = vunpack.c.l.b16 %v2432
        %v2451 = vpack.c.b16 %v2436, %v2435
        %v2452 = vpack.c.b16 %v2438, %v2437
        %v2453 = vpack.c.b16 %v2440, %v2439
        %v2454 = vpack.c.b16 %v2442, %v2441
        %v2455 = vpack.c.b16 %v2444, %v2443
        %v2456 = vpack.c.b16 %v2446, %v2445
        %v2457 = vpack.c.b16 %v2448, %v2447
        %v2458 = vpack.c.b16 %v2450, %v2449
        %v2460 = vsel %vm644, %v2451, 0
        %v2463 = vsel %vm644, %v2452, 0
        %v2466 = vsel %vm644, %v2453, 0
        %v2469 = vsel %vm644, %v2454, 0
        %v2472 = vsel %vm644, %v2455, 0
        %v2475 = vsel %vm644, %v2456, 0
        %v2478 = vsel %vm644, %v2457, 0
        %v2481 = vsel %vm644, %v2458, 0
        %v2484 = vsel %vm669, %v2434, 0
        %2486 = vmatprep.subr.bf16.mxu0 0
        %2487 = vmatpush1.bf16.msra.mxu0 %v2484
        %2488 = vmatprep.subr.bf16.mxu0 0
        %2489 = vmatpush1.bf16.msra.mxu0 0
        %2490 = vmatprep.subr.bf16.mxu0 0
        %2491 = vmatpush1.bf16.msra.mxu0 0
        %2492 = vmatprep.subr.bf16.mxu0 0
        %2493 = vmatpush1.bf16.msra.mxu0 0
        %2494 = vmatprep.subr.bf16.mxu0 0
        %2495 = vmatpush1.bf16.msra.mxu0 0
        %2496 = vmatprep.subr.bf16.mxu0 0
        %2497 = vmatpush1.bf16.msra.mxu0 0
        %2498 = vmatprep.subr.bf16.mxu0 0
        %2499 = vmatpush1.bf16.msra.mxu0 0
        %2500 = vmatprep.subr.bf16.mxu0 0
        %2501 = vmatpush1.bf16.msra.mxu0 0
        %2502 = vmatprep.subr.bf16.mxu0 0
        %2503 = vmatpush1.bf16.msra.mxu0 0
        %2504 = vmatprep.subr.bf16.mxu0 0
        %2505 = vmatpush1.bf16.msra.mxu0 0
        %2506 = vmatprep.subr.bf16.mxu0 0
        %2507 = vmatpush1.bf16.msra.mxu0 0
        %2508 = vmatprep.subr.bf16.mxu0 0
        %2509 = vmatpush1.bf16.msra.mxu0 0
        %2510 = vmatprep.subr.bf16.mxu0 0
        %2511 = vmatpush1.bf16.msra.mxu0 0
        %2512 = vmatprep.subr.bf16.mxu0 0
        %2513 = vmatpush1.bf16.msra.mxu0 0
        %2514 = vmatprep.subr.bf16.mxu0 0
        %2515 = vmatpush1.bf16.msra.mxu0 0
        %2516 = vmatprep.subr.bf16.mxu0 0
        %2517 = vmatpush1.bf16.msra.mxu0 0
        %2518 = vmatprep.mubr.bf16.mxu0 0
        %2519 = vmatmul.mubr.bf16.gmra.mrb[0].mxu0 %v2460
        %v2520 = vpop.f32.mrb[0].mxu0
        %v2521 = vadd.f32 0.0, %v2520
        %v2522 = vpop.f32.mrb[0].mxu0
        %v2523 = vpop.f32.mrb[0].mxu0
        %v2524 = vadd.f32 0.0, %v2523
        %v2525 = vpop.f32.mrb[0].mxu0
        %2526 = vmatprep.mubr.bf16.mxu0 0
        %2527 = vmatmul.mubr.bf16.gmra.mrb[0].mxu0 %v2463
        %v2528 = vpop.f32.mrb[0].mxu0
        %v2529 = vadd.f32 0.0, %v2528
        %v2530 = vpop.f32.mrb[0].mxu0
        %v2531 = vpop.f32.mrb[0].mxu0
        %v2532 = vadd.f32 0.0, %v2531
        %v2533 = vpop.f32.mrb[0].mxu0
        %2534 = vmatprep.mubr.bf16.mxu0 0
        %2535 = vmatmul.mubr.bf16.gmra.mrb[0].mxu0 %v2466
        %v2536 = vpop.f32.mrb[0].mxu0
        %v2537 = vadd.f32 0.0, %v2536
        %v2538 = vpop.f32.mrb[0].mxu0
        %v2539 = vpop.f32.mrb[0].mxu0
        %v2540 = vadd.f32 0.0, %v2539
        %v2541 = vpop.f32.mrb[0].mxu0
        %2542 = vmatprep.mubr.bf16.mxu0 0
        %2543 = vmatmul.mubr.bf16.gmra.mrb[0].mxu0 %v2469
        %v2544 = vpop.f32.mrb[0].mxu0
        %v2545 = vadd.f32 0.0, %v2544
        %v2546 = vpop.f32.mrb[0].mxu0
        %v2547 = vpop.f32.mrb[0].mxu0
        %v2548 = vadd.f32 0.0, %v2547
        %v2549 = vpop.f32.mrb[0].mxu0
        %2550 = vmatprep.mubr.bf16.mxu0 0
        %2551 = vmatmul.mubr.bf16.gmra.mrb[0].mxu0 %v2472
        %v2552 = vpop.f32.mrb[0].mxu0
        %v2553 = vadd.f32 0.0, %v2552
        %v2554 = vpop.f32.mrb[0].mxu0
        %v2555 = vpop.f32.mrb[0].mxu0
        %v2556 = vadd.f32 0.0, %v2555
        %v2557 = vpop.f32.mrb[0].mxu0
        %2558 = vmatprep.mubr.bf16.mxu0 0
        %2559 = vmatmul.mubr.bf16.gmra.mrb[0].mxu0 %v2475
        %v2560 = vpop.f32.mrb[0].mxu0
        %v2561 = vadd.f32 0.0, %v2560
        %v2562 = vpop.f32.mrb[0].mxu0
        %v2563 = vpop.f32.mrb[0].mxu0
        %v2564 = vadd.f32 0.0, %v2563
        %v2565 = vpop.f32.mrb[0].mxu0
        %2566 = vmatprep.mubr.bf16.mxu0 0
        %2567 = vmatmul.mubr.bf16.gmra.mrb[0].mxu0 %v2478
        %v2568 = vpop.f32.mrb[0].mxu0
        %v2569 = vadd.f32 0.0, %v2568
        %v2570 = vpop.f32.mrb[0].mxu0
        %v2571 = vpop.f32.mrb[0].mxu0
        %v2572 = vadd.f32 0.0, %v2571
        %v2573 = vpop.f32.mrb[0].mxu0
        %2574 = vmatprep.mubr.bf16.mxu0 0
        %2575 = vmatmul.mubr.bf16.gmra.mrb[0].mxu0 %v2481
        %v2576 = vpop.f32.mrb[0].mxu0
        %v2577 = vadd.f32 0.0, %v2576
        %v2578 = vpop.f32.mrb[0].mxu0
        %v2579 = vpop.f32.mrb[0].mxu0
        %v2580 = vadd.f32 0.0, %v2579
        %v2581 = vpop.f32.mrb[0].mxu0
        %2582 = vdwg.mxu0
        %v2583 = vadd.f32 %v2201, %v2521
        %v2584 = vadd.f32 %v2202, %v2524
        %v2585 = vadd.f32 %v2203, %v2529
        %v2586 = vadd.f32 %v2204, %v2532
        %v2587 = vadd.f32 %v2205, %v2537
        %v2588 = vadd.f32 %v2206, %v2540
        %v2589 = vadd.f32 %v2207, %v2545
        %v2590 = vadd.f32 %v2208, %v2548
        %v2591 = vadd.f32 %v2209, %v2553
        %v2592 = vadd.f32 %v2210, %v2556
        %v2593 = vadd.f32 %v2211, %v2561
        %v2594 = vadd.f32 %v2212, %v2564
        %v2595 = vadd.f32 %v2213, %v2569
        %v2596 = vadd.f32 %v2214, %v2572
        %v2597 = vadd.f32 %v2215, %v2577
        %v2598 = vadd.f32 %v2216, %v2580
        %v2599 = vld [vmem:[%s2018] sm:$0xe]
        %v2600 = vld [vmem:[%s2018 + $0xc] sm:$0xe]
        %v2601 = vld [vmem:[%s2018 + $0x18] sm:$0xe]
        %v2602 = vld [vmem:[%s2018 + $0x24] sm:$0xe]
        %v2603 = vld [vmem:[%s2018 + $0x30] sm:$0xe]
        %v2604 = vld [vmem:[%s2018 + $0x3c] sm:$0xe]
        %v2605 = vld [vmem:[%s2018 + $0x48] sm:$0xe]
        %v2606 = vld [vmem:[%s2018 + $0x54] sm:$0xe]
        %v2631 = vrot.slane %v2599, 5
        %v2632 = vrot.slane %v2631, 4
        %v2633 = vrot.slane %v2218, 5
        %v2634 = vsel %vm960, %v2632, %v2633
        %v2635 = vrot.slane %v2633, 4
        %v2636 = vrot.slane %v2219, 5
        %v2637 = vsel %vm960, %v2635, %v2636
        %v2638 = vrot.slane %v2600, 5
        %v2639 = vrot.slane %v2638, 4
        %v2640 = vrot.slane %v2221, 5
        %v2641 = vsel %vm960, %v2639, %v2640
        %v2642 = vrot.slane %v2640, 4
        %v2643 = vrot.slane %v2222, 5
        %v2644 = vsel %vm960, %v2642, %v2643
        %v2645 = vrot.slane %v2601, 5
        %v2646 = vrot.slane %v2645, 4
        %v2647 = vrot.slane %v2224, 5
        %v2648 = vsel %vm960, %v2646, %v2647
        %v2649 = vrot.slane %v2647, 4
        %v2650 = vrot.slane %v2225, 5
        %v2651 = vsel %vm960, %v2649, %v2650
        %v2652 = vrot.slane %v2602, 5
        %v2653 = vrot.slane %v2652, 4
        %v2654 = vrot.slane %v2227, 5
        %v2655 = vsel %vm960, %v2653, %v2654
        %v2656 = vrot.slane %v2654, 4
        %v2657 = vrot.slane %v2228, 5
        %v2658 = vsel %vm960, %v2656, %v2657
        %v2659 = vrot.slane %v2603, 5
        %v2660 = vrot.slane %v2659, 4
        %v2661 = vrot.slane %v2230, 5
        %v2662 = vsel %vm960, %v2660, %v2661
        %v2663 = vrot.slane %v2661, 4
        %v2664 = vrot.slane %v2231, 5
        %v2665 = vsel %vm960, %v2663, %v2664
        %v2666 = vrot.slane %v2604, 5
        %v2667 = vrot.slane %v2666, 4
        %v2668 = vrot.slane %v2233, 5
        %v2669 = vsel %vm960, %v2667, %v2668
        %v2670 = vrot.slane %v2668, 4
        %v2671 = vrot.slane %v2234, 5
        %v2672 = vsel %vm960, %v2670, %v2671
        %v2673 = vrot.slane %v2605, 5
        %v2674 = vrot.slane %v2673, 4
        %v2675 = vrot.slane %v2236, 5
        %v2676 = vsel %vm960, %v2674, %v2675
        %v2677 = vrot.slane %v2675, 4
        %v2678 = vrot.slane %v2237, 5
        %v2679 = vsel %vm960, %v2677, %v2678
        %v2680 = vrot.slane %v2606, 5
        %v2681 = vrot.slane %v2680, 4
        %v2682 = vrot.slane %v2239, 5
        %v2683 = vsel %vm960, %v2681, %v2682
        %v2684 = vrot.slane %v2682, 4
        %v2685 = vrot.slane %v2240, 5
        %v2686 = vsel %vm960, %v2684, %v2685
        %s2687 = scalar_lea.vmem %s2, 16
        %v2688 = vld [vmem:[%s2687] sm:$0x3]
        %v2689 = vunpack.c.l.b16 %v2634
        %v2690 = vunpack.c.l.b16 %v2637
        %v2691 = vunpack.c.l.b16 %v2641
        %v2692 = vunpack.c.l.b16 %v2644
        %v2693 = vunpack.c.l.b16 %v2648
        %v2694 = vunpack.c.l.b16 %v2651
        %v2695 = vunpack.c.l.b16 %v2655
        %v2696 = vunpack.c.l.b16 %v2658
        %v2697 = vunpack.c.l.b16 %v2662
        %v2698 = vunpack.c.l.b16 %v2665
        %v2699 = vunpack.c.l.b16 %v2669
        %v2700 = vunpack.c.l.b16 %v2672
        %v2701 = vunpack.c.l.b16 %v2676
        %v2702 = vunpack.c.l.b16 %v2679
        %v2703 = vunpack.c.l.b16 %v2683
        %v2704 = vunpack.c.l.b16 %v2686
        %v2705 = vpack.c.b16 %v2690, %v2689
        %v2706 = vpack.c.b16 %v2692, %v2691
        %v2707 = vpack.c.b16 %v2694, %v2693
        %v2708 = vpack.c.b16 %v2696, %v2695
        %v2709 = vpack.c.b16 %v2698, %v2697
        %v2710 = vpack.c.b16 %v2700, %v2699
        %v2711 = vpack.c.b16 %v2702, %v2701
        %v2712 = vpack.c.b16 %v2704, %v2703
        %v2714 = vsel %vm644, %v2705, 0
        %v2717 = vsel %vm644, %v2706, 0
        %v2720 = vsel %vm644, %v2707, 0
        %v2723 = vsel %vm644, %v2708, 0
        %v2726 = vsel %vm644, %v2709, 0
        %v2729 = vsel %vm644, %v2710, 0
        %v2732 = vsel %vm644, %v2711, 0
        %v2735 = vsel %vm644, %v2712, 0
        %v2738 = vsel %vm669, %v2688, 0
        %2740 = vmatprep.subr.bf16.mxu0 0
        %2741 = vmatpush1.bf16.msra.mxu0 %v2738
        %2742 = vmatprep.subr.bf16.mxu0 0
        %2743 = vmatpush1.bf16.msra.mxu0 0
        %2744 = vmatprep.subr.bf16.mxu0 0
        %2745 = vmatpush1.bf16.msra.mxu0 0
        %2746 = vmatprep.subr.bf16.mxu0 0
        %2747 = vmatpush1.bf16.msra.mxu0 0
        %2748 = vmatprep.subr.bf16.mxu0 0
        %2749 = vmatpush1.bf16.msra.mxu0 0
        %2750 = vmatprep.subr.bf16.mxu0 0
        %2751 = vmatpush1.bf16.msra.mxu0 0
        %2752 = vmatprep.subr.bf16.mxu0 0
        %2753 = vmatpush1.bf16.msra.mxu0 0
        %2754 = vmatprep.subr.bf16.mxu0 0
        %2755 = vmatpush1.bf16.msra.mxu0 0
        %2756 = vmatprep.subr.bf16.mxu0 0
        %2757 = vmatpush1.bf16.msra.mxu0 0
        %2758 = vmatprep.subr.bf16.mxu0 0
        %2759 = vmatpush1.bf16.msra.mxu0 0
        %2760 = vmatprep.subr.bf16.mxu0 0
        %2761 = vmatpush1.bf16.msra.mxu0 0
        %2762 = vmatprep.subr.bf16.mxu0 0
        %2763 = vmatpush1.bf16.msra.mxu0 0
        %2764 = vmatprep.subr.bf16.mxu0 0
        %2765 = vmatpush1.bf16.msra.mxu0 0
        %2766 = vmatprep.subr.bf16.mxu0 0
        %2767 = vmatpush1.bf16.msra.mxu0 0
        %2768 = vmatprep.subr.bf16.mxu0 0
        %2769 = vmatpush1.bf16.msra.mxu0 0
        %2770 = vmatprep.subr.bf16.mxu0 0
        %2771 = vmatpush1.bf16.msra.mxu0 0
        %2772 = vmatprep.mubr.bf16.mxu0 0
        %2773 = vmatmul.mubr.bf16.gmra.mrb[0].mxu0 %v2714
        %v2774 = vpop.f32.mrb[0].mxu0
        %v2775 = vadd.f32 0.0, %v2774
        %v2776 = vpop.f32.mrb[0].mxu0
        %v2777 = vpop.f32.mrb[0].mxu0
        %v2778 = vadd.f32 0.0, %v2777
        %v2779 = vpop.f32.mrb[0].mxu0
        %2780 = vmatprep.mubr.bf16.mxu0 0
        %2781 = vmatmul.mubr.bf16.gmra.mrb[0].mxu0 %v2717
        %v2782 = vpop.f32.mrb[0].mxu0
        %v2783 = vadd.f32 0.0, %v2782
        %v2784 = vpop.f32.mrb[0].mxu0
        %v2785 = vpop.f32.mrb[0].mxu0
        %v2786 = vadd.f32 0.0, %v2785
        %v2787 = vpop.f32.mrb[0].mxu0
        %2788 = vmatprep.mubr.bf16.mxu0 0
        %2789 = vmatmul.mubr.bf16.gmra.mrb[0].mxu0 %v2720
        %v2790 = vpop.f32.mrb[0].mxu0
        %v2791 = vadd.f32 0.0, %v2790
        %v2792 = vpop.f32.mrb[0].mxu0
        %v2793 = vpop.f32.mrb[0].mxu0
        %v2794 = vadd.f32 0.0, %v2793
        %v2795 = vpop.f32.mrb[0].mxu0
        %2796 = vmatprep.mubr.bf16.mxu0 0
        %2797 = vmatmul.mubr.bf16.gmra.mrb[0].mxu0 %v2723
        %v2798 = vpop.f32.mrb[0].mxu0
        %v2799 = vadd.f32 0.0, %v2798
        %v2800 = vpop.f32.mrb[0].mxu0
        %v2801 = vpop.f32.mrb[0].mxu0
        %v2802 = vadd.f32 0.0, %v2801
        %v2803 = vpop.f32.mrb[0].mxu0
        %2804 = vmatprep.mubr.bf16.mxu0 0
        %2805 = vmatmul.mubr.bf16.gmra.mrb[0].mxu0 %v2726
        %v2806 = vpop.f32.mrb[0].mxu0
        %v2807 = vadd.f32 0.0, %v2806
        %v2808 = vpop.f32.mrb[0].mxu0
        %v2809 = vpop.f32.mrb[0].mxu0
        %v2810 = vadd.f32 0.0, %v2809
        %v2811 = vpop.f32.mrb[0].mxu0
        %2812 = vmatprep.mubr.bf16.mxu0 0
        %2813 = vmatmul.mubr.bf16.gmra.mrb[0].mxu0 %v2729
        %v2814 = vpop.f32.mrb[0].mxu0
        %v2815 = vadd.f32 0.0, %v2814
        %v2816 = vpop.f32.mrb[0].mxu0
        %v2817 = vpop.f32.mrb[0].mxu0
        %v2818 = vadd.f32 0.0, %v2817
        %v2819 = vpop.f32.mrb[0].mxu0
        %2820 = vmatprep.mubr.bf16.mxu0 0
        %2821 = vmatmul.mubr.bf16.gmra.mrb[0].mxu0 %v2732
        %v2822 = vpop.f32.mrb[0].mxu0
        %v2823 = vadd.f32 0.0, %v2822
        %v2824 = vpop.f32.mrb[0].mxu0
        %v2825 = vpop.f32.mrb[0].mxu0
        %v2826 = vadd.f32 0.0, %v2825
        %v2827 = vpop.f32.mrb[0].mxu0
        %2828 = vmatprep.mubr.bf16.mxu0 0
        %2829 = vmatmul.mubr.bf16.gmra.mrb[0].mxu0 %v2735
        %v2830 = vpop.f32.mrb[0].mxu0
        %v2831 = vadd.f32 0.0, %v2830
        %v2832 = vpop.f32.mrb[0].mxu0
        %v2833 = vpop.f32.mrb[0].mxu0
        %v2834 = vadd.f32 0.0, %v2833
        %v2835 = vpop.f32.mrb[0].mxu0
        %2836 = vdwg.mxu0
        %v2837 = vadd.f32 %v2583, %v2775
        %v2838 = vadd.f32 %v2584, %v2778
        %v2839 = vadd.f32 %v2585, %v2783
        %v2840 = vadd.f32 %v2586, %v2786
        %v2841 = vadd.f32 %v2587, %v2791
        %v2842 = vadd.f32 %v2588, %v2794
        %v2843 = vadd.f32 %v2589, %v2799
        %v2844 = vadd.f32 %v2590, %v2802
        %v2845 = vadd.f32 %v2591, %v2807
        %v2846 = vadd.f32 %v2592, %v2810
        %v2847 = vadd.f32 %v2593, %v2815
        %v2848 = vadd.f32 %v2594, %v2818
        %v2849 = vadd.f32 %v2595, %v2823
        %v2850 = vadd.f32 %v2596, %v2826
        %v2851 = vadd.f32 %v2597, %v2831
        %v2852 = vadd.f32 %v2598, %v2834
        %v2853 = vld [vmem:[%s3] sm:$0x1]
        %v2854 = vld [vmem:[%s4] sm:$0x1]
        %v2856 = vlaneseq
        %v2857 = vshrl.u32 %v2856, 7
        %v2858 = vsub.s32 0, %v2857
        %v2859 = vrot.slane %v2853, %v2858
        %v2861 = vmul.f32 %v2837, %v2859
        %v2862 = vmul.f32 %v2838, %v2859
        %v2864 = vlaneseq
        %v2865 = vshrl.u32 %v2864, 7
        %v2866 = vsub.s32 0, %v2865
        %v2867 = vrot.slane %v2854, %v2866
        %v2869 = vadd.f32 %v2861, %v2867
        %v2870 = vadd.f32 %v2862, %v2867
        %v2871 = vmax.f32 %v2869, 0.0
        %v2872 = vmax.f32 %v2870, 0.0
        %v2873 = vmul.f32 %v2839, %v2859
        %v2874 = vmul.f32 %v2840, %v2859
        %v2875 = vadd.f32 %v2873, %v2867
        %v2876 = vadd.f32 %v2874, %v2867
        %v2877 = vmax.f32 %v2875, 0.0
        %v2878 = vmax.f32 %v2876, 0.0
        %v2879 = vmax.f32 %v2871, %v2877
        %v2880 = vmax.f32 %v2872, %v2878
        %v2881 = vmul.f32 %v2841, %v2859
        %v2882 = vmul.f32 %v2842, %v2859
        %v2883 = vadd.f32 %v2881, %v2867
        %v2884 = vadd.f32 %v2882, %v2867
        %v2885 = vmax.f32 %v2883, 0.0
        %v2886 = vmax.f32 %v2884, 0.0
        %v2887 = vmul.f32 %v2843, %v2859
        %v2888 = vmul.f32 %v2844, %v2859
        %v2889 = vadd.f32 %v2887, %v2867
        %v2890 = vadd.f32 %v2888, %v2867
        %v2891 = vmax.f32 %v2889, 0.0
        %v2892 = vmax.f32 %v2890, 0.0
        %v2893 = vmax.f32 %v2885, %v2891
        %v2894 = vmax.f32 %v2886, %v2892
        %v2895 = vmul.f32 %v2845, %v2859
        %v2896 = vmul.f32 %v2846, %v2859
        %v2897 = vadd.f32 %v2895, %v2867
        %v2898 = vadd.f32 %v2896, %v2867
        %v2899 = vmax.f32 %v2897, 0.0
        %v2900 = vmax.f32 %v2898, 0.0
        %v2901 = vmul.f32 %v2847, %v2859
        %v2902 = vmul.f32 %v2848, %v2859
        %v2903 = vadd.f32 %v2901, %v2867
        %v2904 = vadd.f32 %v2902, %v2867
        %v2905 = vmax.f32 %v2903, 0.0
        %v2906 = vmax.f32 %v2904, 0.0
        %v2907 = vmax.f32 %v2899, %v2905
        %v2908 = vmax.f32 %v2900, %v2906
        %v2909 = vmul.f32 %v2849, %v2859
        %v2910 = vmul.f32 %v2850, %v2859
        %v2911 = vadd.f32 %v2909, %v2867
        %v2912 = vadd.f32 %v2910, %v2867
        %v2913 = vmax.f32 %v2911, 0.0
        %v2914 = vmax.f32 %v2912, 0.0
        %v2915 = vmul.f32 %v2851, %v2859
        %v2916 = vmul.f32 %v2852, %v2859
        %v2917 = vadd.f32 %v2915, %v2867
        %v2918 = vadd.f32 %v2916, %v2867
        %v2919 = vmax.f32 %v2917, 0.0
        %v2920 = vmax.f32 %v2918, 0.0
        %v2921 = vmax.f32 %v2913, %v2919
        %v2922 = vmax.f32 %v2914, %v2920
        %2923 = vst [vmem:[#allocation3] sm:$0xff] %v2879
        %2924 = vst [vmem:[#allocation3 + $0x8] sm:$0xff] %v2880
        %2925 = vst [vmem:[#allocation3 + $0x10] sm:$0xff] %v2893
        %2926 = vst [vmem:[#allocation3 + $0x18] sm:$0xff] %v2894
        %2927 = vst [vmem:[#allocation3 + $0x20] sm:$0xff] %v2907
        %2928 = vst [vmem:[#allocation3 + $0x28] sm:$0xff] %v2908
        %2929 = vst [vmem:[#allocation3 + $0x30] sm:$0xff] %v2921
        %2930 = vst [vmem:[#allocation3 + $0x38] sm:$0xff] %v2922
        %v2931 = vld [vmem:[#allocation3] ss:$2 sm:$0xff]
        %s2932 = scalar_lea.vmem [#allocation3], 16
        %v2933 = vld [vmem:[%s2932] ss:$2 sm:$0xff]
        %s2934 = scalar_lea.vmem [#allocation3], 32
        %v2935 = vld [vmem:[%s2934] ss:$2 sm:$0xff]
        %s2936 = scalar_lea.vmem [#allocation3], 48
        %v2937 = vld [vmem:[%s2936] ss:$2 sm:$0xff]
        %s2938 = scalar_lea.vmem [#allocation3], 1
        %v2939 = vld [vmem:[%s2938] ss:$2 sm:$0xff]
        %s2940 = scalar_lea.vmem [#allocation3], 17
        %v2941 = vld [vmem:[%s2940] ss:$2 sm:$0xff]
        %s2942 = scalar_lea.vmem [#allocation3], 33
        %v2943 = vld [vmem:[%s2942] ss:$2 sm:$0xff]
        %s2944 = scalar_lea.vmem [#allocation3], 49
        %v2945 = vld [vmem:[%s2944] ss:$2 sm:$0xff]
        %v2946 = vmax.f32 %v2931, %v2939
        %v2947 = vmax.f32 %v2933, %v2941
        %v2948 = vmax.f32 %v2935, %v2943
        %v2949 = vmax.f32 %v2937, %v2945
        %2950 = vst [vmem:[%s297] sm:$0xff] %v2946
        %2951 = vst [vmem:[%s297 + $0x8] sm:$0xff] %v2947
        %2952 = vst [vmem:[%s297 + $0x10] sm:$0xff] %v2948
        %2953 = vst [vmem:[%s297 + $0x18] sm:$0xff] %v2949
        %s2954 = sand.u32 %s164, 1
        %s2955 = scalar_lea.sflag [#allocation5], %s2954
        %s2956 = sand.u32 %s164, 1
        %s2957 = smul.addr %s2956, 32
        %s2958 = scalar_lea.vmem [#allocation4], %s2957
        // Predicated region
        $region41: #{tpu_custom_call.1} parent=39 // pred_check
          %p2959 = pneg %p174
        $region42: #{tpu_custom_call.1} parent=39 // pred_check_branch
          %2961 = sbr.rel (%p2959) target = $region44
        $region43: #{tpu_custom_call.1} parent=39 // pred_region
          %s2963 = ssub.s32 512, 512
          %2964 = vsyncadd %s2955, %s2963
          %s2965 = smul.addr %s24, 4
          %s2966 = smul.addr %s23, 8
          %s2967 = sadd.s32 %s2965, %s2966
          %s2968 = smul.addr %s2967, 128
          %s2969 = scalar_lea.hbm %s5, %s2968
          %s2970 = sshll.u32 %s2958, 4
          %s2971 = int_to_ptr.vmem [resolvable:$true] %s2970
          %2976 = dma.vmem_to_hbm [thread:$0]  %s2971, 512, %s2969, %s2955, 128, 128, 8
        $region44: #{tpu_custom_call.1} parent=39 // pred_fallthru
          _
      $region40: #{tpu_custom_call.1} parent=5 // pred_fallthru
        _
      %p2977 = scmp.le.s32.totalorder 2, %s14
      // Predicated region
      $region45: #{tpu_custom_call.1} parent=5 // pred_check
        %p2978 = pneg %p2977
      $region46: #{tpu_custom_call.1} parent=5 // pred_check_branch
        %2980 = sbr.rel (%p2978) target = $region48
      $region47: #{tpu_custom_call.1} parent=5 // pred_region
        %s2981 = ssub.s32 %s14, 2
        // Predicated region
        $region49: #{tpu_custom_call.1} parent=47 // pred_check
          %p2982 = pneg %p180
        $region50: #{tpu_custom_call.1} parent=47 // pred_check_branch
          %2984 = sbr.rel (%p2982) target = $region52
        $region51: #{tpu_custom_call.1} parent=47 // pred_region
          %s2985 = sand.u32 %s165, 1
          %s2986 = scalar_lea.sflag [#allocation5], %s2985
          %s2987 = sand.u32 %s165, 1
          %s2988 = smul.addr %s2987, 32
          %s2989 = scalar_lea.vmem [#allocation4], %s2988
          %2990 = dma.done %s2986, 512
        $region52: #{tpu_custom_call.1} parent=47 // pred_fallthru
          _
      $region48: #{tpu_custom_call.1} parent=5 // pred_fallthru
        _
    $region6: #{tpu_custom_call.1} parent=1 // loop_footer
      %s18 = sadd.s32 1, %s14
    $region7: #{tpu_custom_call.1} parent=1 // loop_footer_branch
      %13 = sbr.rel target = $region3
    $region8: #{tpu_custom_call.1} parent=1 // loop_exit
      _
    %2991 = vsyncpa [#allocation5], 1
    %s2992 = scalar_lea.sflag [#allocation5], 1
    %2993 = vsyncpa %s2992, 1

</llo_original>
